<compile_context>
chip_gen: v5e
topology: v5e:2x2
jax: 0.10.0
libtpu: 0.0.40
codegen_flags: <defaults>
</compile_context>

<pallas_src>
import functools

import jax
import jax.numpy as jnp
from jax import lax
from jax.experimental import pallas as pl
from jax.experimental.pallas import tpu as pltpu


_LANE = 128
_VMEM_LIMIT = 32 * 1024 * 1024   # safe scoped-VMEM budget on v5e/v6e/v7x


def _round_up(v, m):
    return (v + m - 1) // m * m


def _pad_channels(x, c_to):
    pad = c_to - x.shape[-1]
    if pad == 0:
        return x
    cfg = [(0, 0)] * (x.ndim - 1) + [(0, pad)]
    return jnp.pad(x, cfg)


def _pad2d(w, rows, cols):
    return jnp.pad(w, ((0, rows - w.shape[0]), (0, cols - w.shape[1])))


def _pick_row_block(ho, target=16):
    """Largest divisor of ho that is <= target (row-block size for conv2)."""
    r = min(ho, target)
    while ho % r:
        r -= 1
    return r


# ---------------------------------------------------------------------------
# Pallas kernels
# ---------------------------------------------------------------------------
def _mm_bias_act_kernel(x_ref, w_ref, b_ref, o_ref, *, relu):
    # act((x @ w) + b); BN scale already folded into w.
    acc = jnp.dot(x_ref[...], w_ref[...], preferred_element_type=jnp.float32)
    acc = acc + b_ref[...]
    if relu:
        acc = jnp.maximum(acc, 0.0)
    o_ref[...] = acc.astype(o_ref.dtype)


def _mm_bias_res_relu_kernel(x_ref, w_ref, b_ref, r_ref, o_ref):
    # relu((x @ w) + b + residual)  -- identity-shortcut conv3.
    acc = jnp.dot(x_ref[...], w_ref[...], preferred_element_type=jnp.float32)
    acc = acc + b_ref[...] + r_ref[...].astype(jnp.float32)
    o_ref[...] = jnp.maximum(acc, 0.0).astype(o_ref.dtype)


def _mm_dual_bias_relu_kernel(x_ref, w_ref, xd_ref, wd_ref, b_ref, o_ref):
    # relu((o2 @ w3) + (xd @ wd) + b3 + bd) -- conv3 with fused downsample.
    acc = jnp.dot(x_ref[...], w_ref[...], preferred_element_type=jnp.float32)
    acc = acc + jnp.dot(xd_ref[...], wd_ref[...],
                        preferred_element_type=jnp.float32)
    acc = acc + b_ref[...]
    o_ref[...] = jnp.maximum(acc, 0.0).astype(o_ref.dtype)


def _conv3x3_bias_relu_kernel(x_ref, w_ref, b_ref, o_ref, *,
                              stride, rp, cp_pad, rows_out, wo):
    """3x3 conv over a phase-packed slab, slab-per-tap MXU dots.

    x_ref: (s*s*rp*cp_pad, C) bf16  -- phase-packed padded input for one image,
           phase (p, q) occupies rows [(p*s+q)*rp*cp_pad, ...), laid out as
           (rp, cp_pad) row-major with phase[p,q][a,b] = xpad[a*s+p, b*s+q].
    w_ref: (9, C, Cout) bf16 (BN scale folded), b_ref: (1, Cout) f32.
    o_ref: (rows_out, wo, Cout) bf16 -- one row block of the output.
    """
    s = stride
    delta = 2 // s                       # max(dh // s) == max(dw // s)
    rows_in = rows_out + delta
    cout = o_ref.shape[-1]
    row0 = pl.multiple_of(pl.program_id(1) * (rows_out * cp_pad), 8)

    acc = None
    for dh in range(3):                  # static, fully unrolled (LLO-visible)
        for dw in range(3):
            tap = dh * 3 + dw
            phase = (dh % s) * s + (dw % s)
            start = pl.multiple_of(phase * (rp * cp_pad) + row0, 8)
            slab = x_ref[pl.ds(start, rows_in * cp_pad), :]     # bf16, large M
            y = jnp.dot(slab, w_ref[tap],
                        preferred_element_type=jnp.float32)
            y = y.reshape(rows_in, cp_pad, cout)                # layout-preserving
            sh, sw = dh // s, dw // s
            contrib = y[sh:sh + rows_out, sw:sw + wo, :]        # once per tap
            acc = contrib if acc is None else acc + contrib
    bias = b_ref[...].reshape(1, 1, cout)
    acc = jnp.maximum(acc + bias, 0.0)
    o_ref[...] = acc.astype(o_ref.dtype)


# ---------------------------------------------------------------------------
# Pallas wrappers
# ---------------------------------------------------------------------------
def fused_matmul_bias(x, w, b, *, residual=None, relu=True,
                      out_dtype=jnp.bfloat16, tm=512):
    """act((x @ w) + b [+ residual]); weight kept fully VMEM-resident."""
    M, K = x.shape
    N = w.shape[1]
    tm = min(tm, _round_up(M, 8))
    Mp = _round_up(M, tm)
    if Mp != M:
        x = jnp.pad(x, ((0, Mp - M), (0, 0)))
        if residual is not None:
            residual = jnp.pad(residual, ((0, Mp - M), (0, 0)))
    b2 = jnp.reshape(b, (1, N)).astype(jnp.float32)

    grid = (Mp // tm,)
    x_spec = pl.BlockSpec((tm, K), lambda i: (i, 0))
    w_spec = pl.BlockSpec((K, N), lambda i: (0, 0))    # fetched once, resident
    b_spec = pl.BlockSpec((1, N), lambda i: (0, 0))
    o_spec = pl.BlockSpec((tm, N), lambda i: (i, 0))

    if residual is None:
        kernel = functools.partial(_mm_bias_act_kernel, relu=relu)
        in_specs = [x_spec, w_spec, b_spec]
        args = (x, w, b2)
    else:
        kernel = _mm_bias_res_relu_kernel
        in_specs = [x_spec, w_spec, b_spec, o_spec]
        args = (x, w, b2, residual)

    out = pl.pallas_call(
        kernel,
        out_shape=jax.ShapeDtypeStruct((Mp, N), out_dtype),
        grid_spec=pltpu.PrefetchScalarGridSpec(
            num_scalar_prefetch=0, grid=grid,
            in_specs=in_specs, out_specs=o_spec),
        compiler_params=pltpu.CompilerParams(
            dimension_semantics=("parallel",),
            vmem_limit_bytes=_VMEM_LIMIT),
    )(*args)
    return out[:M] if Mp != M else out


def fused_matmul_dual_bias_relu(x, w, xd, wd, b, *, out_dtype=jnp.bfloat16,
                                tm=512):
    """relu((x @ w) + (xd @ wd) + b): conv3 with the downsample branch fused."""
    M, K = x.shape
    Kd = xd.shape[1]
    N = w.shape[1]
    tm = min(tm, _round_up(M, 8))
    Mp = _round_up(M, tm)
    if Mp != M:
        x = jnp.pad(x, ((0, Mp - M), (0, 0)))
        xd = jnp.pad(xd, ((0, Mp - M), (0, 0)))
    b2 = jnp.reshape(b, (1, N)).astype(jnp.float32)

    out = pl.pallas_call(
        _mm_dual_bias_relu_kernel,
        out_shape=jax.ShapeDtypeStruct((Mp, N), out_dtype),
        grid_spec=pltpu.PrefetchScalarGridSpec(
            num_scalar_prefetch=0, grid=(Mp // tm,),
            in_specs=[
                pl.BlockSpec((tm, K), lambda i: (i, 0)),
                pl.BlockSpec((K, N), lambda i: (0, 0)),     # resident
                pl.BlockSpec((tm, Kd), lambda i: (i, 0)),
                pl.BlockSpec((Kd, N), lambda i: (0, 0)),    # resident
                pl.BlockSpec((1, N), lambda i: (0, 0)),
            ],
            out_specs=pl.BlockSpec((tm, N), lambda i: (i, 0))),
        compiler_params=pltpu.CompilerParams(
            dimension_semantics=("parallel",),
            vmem_limit_bytes=_VMEM_LIMIT),
    )(x, w, xd, wd, b2)
    return out[:M] if Mp != M else out


def conv3x3_bias_relu(x, w9, b, stride):
    """3x3 conv (padding=1, stride in {1,2}) + bias + ReLU, NHWC.

    x: (N, H, W, C) bf16 (C multiple of 128), w9: (9, C, Cout) bf16 (BN folded),
    b: (Cout,) f32.  Returns (N, Ho, Wo, Cout) bf16.
    """
    n, h, w, c = x.shape
    cout = w9.shape[2]
    s = stride
    assert s in (1, 2), "conv2 stride must be 1 or 2"
    ho = (h - 1) // s + 1
    wo = (w - 1) // s + 1
    delta = 2 // s
    rp = ho + delta
    cp = wo + delta
    cp_pad = _round_up(cp, 8)

    # Phase-pack the padded input: phase (p, q)[a, b] = xpad[a*s + p, b*s + q],
    # each phase padded to (rp, cp_pad) and flattened so every tap is one
    # contiguous, sublane-aligned row window inside the kernel.
    xp = jnp.pad(x, ((0, 0), (1, 1), (1, 1), (0, 0)))
    phases = []
    for p in range(s):
        for q in range(s):
            ph = xp[:, p::s, q::s, :][:, :rp, :cp, :]
            ph = jnp.pad(ph, ((0, 0), (0, rp - ph.shape[1]),
                              (0, cp_pad - ph.shape[2]), (0, 0)))
            phases.append(ph)
    xph = phases[0][:, None] if s == 1 else jnp.stack(phases, axis=1)
    xph = xph.reshape(n, s * s * rp * cp_pad, c)

    rows_out = _pick_row_block(ho)
    n_rb = ho // rows_out
    b2 = jnp.reshape(b, (1, cout)).astype(jnp.float32)

    kernel = functools.partial(_conv3x3_bias_relu_kernel, stride=s, rp=rp,
                               cp_pad=cp_pad, rows_out=rows_out, wo=wo)
    return pl.pallas_call(
        kernel,
        out_shape=jax.ShapeDtypeStruct((n, ho, wo, cout), jnp.bfloat16),
        grid_spec=pltpu.PrefetchScalarGridSpec(
            num_scalar_prefetch=0, grid=(n, n_rb),
            in_specs=[
                # per-image slab: block index constant across the row-block
                # axis, so it is DMA'd once per image.
                pl.BlockSpec((None, s * s * rp * cp_pad, c),
                             lambda i, r: (i, 0, 0)),
                pl.BlockSpec((9, c, cout), lambda i, r: (0, 0, 0)),
                pl.BlockSpec((1, cout), lambda i, r: (0, 0)),
            ],
            out_specs=pl.BlockSpec((None, rows_out, wo, cout),
                                   lambda i, r: (i, r, 0, 0))),
        compiler_params=pltpu.CompilerParams(
            dimension_semantics=("parallel", "parallel"),
            vmem_limit_bytes=_VMEM_LIMIT),
    )(xph, w9, b2)


# ---------------------------------------------------------------------------
# BN folding + parameter init
# ---------------------------------------------------------------------------
def fold_bn(gamma, beta, mean, var, eps=1e-5):
    s = gamma / jnp.sqrt(var + eps)
    b = beta - mean * s
    return s, b


def init_bottleneck_params(key, in_chan, mid_chan, stride, stride_at_1x1=False):
    out_chan = 4 * mid_chan
    keys = jax.random.split(key, 16)

    def conv_w(k, cout, cin, kh, kw):
        fan_in = cin * kh * kw
        std = (2.0 / fan_in) ** 0.5
        return std * jax.random.normal(k, (cout, cin, kh, kw), jnp.float32)

    def bn_params(k, c):
        k1, k2, k3, k4 = jax.random.split(k, 4)
        gamma = 1.0 + 0.1 * jax.random.normal(k1, (c,), jnp.float32)
        beta = 0.1 * jax.random.normal(k2, (c,), jnp.float32)
        mean = 0.1 * jax.random.normal(k3, (c,), jnp.float32)
        var = 1.0 + 0.1 * jax.random.uniform(k4, (c,), jnp.float32)
        return gamma, beta, mean, var

    params = {
        "w1": conv_w(keys[0], mid_chan, in_chan, 1, 1),
        "bn1": bn_params(keys[1], mid_chan),
        "w2": conv_w(keys[2], mid_chan, mid_chan, 3, 3),
        "bn2": bn_params(keys[3], mid_chan),
        "w3": conv_w(keys[4], out_chan, mid_chan, 1, 1),
        "bn3": bn_params(keys[5], out_chan),
    }
    if in_chan != out_chan or stride != 1:
        params["wd"] = conv_w(keys[6], out_chan, in_chan, 1, 1)
        params["bnd"] = bn_params(keys[7], out_chan)
    return params


# ---------------------------------------------------------------------------
# Bottleneck forward (Pallas)
# ---------------------------------------------------------------------------
def bottleneck_forward(x_nchw, params, *, stride=1, stride_at_1x1=False):
    stride1x1, stride3x3 = (stride, 1) if stride_at_1x1 else (1, stride)
    x = jnp.transpose(x_nchw, (0, 2, 3, 1)).astype(jnp.float32)  # NHWC
    n, h, w, cin = x.shape
    mid = params["w1"].shape[0]
    out_chan = params["w3"].shape[0]
    cin_p = _round_up(cin, _LANE)
    mid_p = _round_up(mid, _LANE)
    out_p = _round_up(out_chan, _LANE)

    xpad = _pad_channels(x, cin_p).astype(jnp.bfloat16)   # bf16 MXU operand

    # --- conv1 (1x1, stride1x1) + bn1 + relu ---------------------------------
    s1, b1 = fold_bn(*params["bn1"])
    w1 = params["w1"].reshape(mid, cin).T * s1[None, :]    # BN scale folded
    w1p = _pad2d(w1, cin_p, mid_p).astype(jnp.bfloat16)
    b1p = jnp.pad(b1, (0, mid_p - mid))
    x1 = xpad[:, ::stride1x1, ::stride1x1, :]
    n1, h1, w1sp, _ = x1.shape
    o1 = fused_matmul_bias(x1.reshape(n1 * h1 * w1sp, cin_p), w1p, b1p,
                           relu=True, out_dtype=jnp.bfloat16)
    o1 = o1.reshape(n1, h1, w1sp, mid_p)

    # --- conv2 (3x3, pad=1, stride3x3) + bn2 + relu (slab-per-tap kernel) ----
    s2, b2 = fold_bn(*params["bn2"])
    w2 = jnp.transpose(params["w2"], (2, 3, 1, 0)).reshape(9, mid, mid)
    w2 = w2 * s2[None, None, :]
    w2p = jnp.pad(w2, ((0, 0), (0, mid_p - mid), (0, mid_p - mid)))
    w2p = w2p.astype(jnp.bfloat16)
    b2p = jnp.pad(b2, (0, mid_p - mid))
    o2 = conv3x3_bias_relu(o1, w2p, b2p, stride3x3)        # (n, h2, w2, mid_p)
    n2, h2, w2sp, _ = o2.shape
    m2 = n2 * h2 * w2sp
    o2f = o2.reshape(m2, mid_p)

    # --- conv3 (1x1) + bn3 + residual + relu (single fused kernel) -----------
    s3, b3 = fold_bn(*params["bn3"])
    w3 = params["w3"].reshape(out_chan, mid).T * s3[None, :]
    w3p = _pad2d(w3, mid_p, out_p).astype(jnp.bfloat16)
    b3p = jnp.pad(b3, (0, out_p - out_chan))

    if "wd" in params:
        sd, bd = fold_bn(*params["bnd"])
        wd = params["wd"].reshape(out_chan, cin).T * sd[None, :]
        wdp = _pad2d(wd, cin_p, out_p).astype(jnp.bfloat16)
        bdp = jnp.pad(bd, (0, out_p - out_chan))
        xd = xpad[:, ::stride, ::stride, :].reshape(m2, cin_p)
        o3 = fused_matmul_dual_bias_relu(o2f, w3p, xd, wdp, b3p + bdp,
                                         out_dtype=jnp.bfloat16)
    else:
        assert cin == out_chan and stride == 1, (
            "identity shortcut requires in_chan == 4*mid_chan and stride == 1")
        res = xpad.reshape(m2, out_p)                      # bf16 residual
        o3 = fused_matmul_bias(o2f, w3p, b3p, residual=res,
                               relu=True, out_dtype=jnp.bfloat16)

    out = o3.reshape(n2, h2, w2sp, out_p)[:, :, :, :out_chan]
    return jnp.transpose(out, (0, 3, 1, 2)).astype(jnp.float32)  # NCHW f32


# ---------------------------------------------------------------------------
# Pure-JAX f32 reference (lax.conv) for the correctness check
# ---------------------------------------------------------------------------
def bottleneck_reference(x_nchw, params, *, stride=1, stride_at_1x1=False):
    stride1x1, stride3x3 = (stride, 1) if stride_at_1x1 else (1, stride)
    x = jnp.transpose(x_nchw, (0, 2, 3, 1)).astype(jnp.float32)

    def conv(x, w_oihw, s, pad):
        w = jnp.transpose(w_oihw, (2, 3, 1, 0))  # HWIO
        return lax.conv_general_dilated(
            x, w, window_strides=(s, s), padding=[(pad, pad), (pad, pad)],
            dimension_numbers=("NHWC", "HWIO", "NHWC"))

    def bn(x, p):
        s, b = fold_bn(*p)
        return x * s + b

    o = jax.nn.relu(bn(conv(x, params["w1"], stride1x1, 0), params["bn1"]))
    o = jax.nn.relu(bn(conv(o, params["w2"], stride3x3, 1), params["bn2"]))
    o = bn(conv(o, params["w3"], 1, 0), params["bn3"])
    if "wd" in params:
        res = bn(conv(x, params["wd"], stride, 0), params["bnd"])
    else:
        res = x
    out = jax.nn.relu(o + res)
    return jnp.transpose(out, (0, 3, 1, 2))


def _check(x, params, stride):
    fwd = jax.jit(functools.partial(bottleneck_forward,
                                    stride=stride, stride_at_1x1=False))
    out = jax.block_until_ready(fwd(x, params))
    ref = jax.block_until_ready(
        bottleneck_reference(x, params, stride=stride, stride_at_1x1=False))
    assert out.shape == ref.shape, (out.shape, ref.shape)
    err = float(jnp.max(jnp.abs(out - ref)))
    scale = float(jnp.max(jnp.abs(ref))) + 1e-6
    # bf16 operands / bf16 inter-stage activations vs f32 reference.
    assert err / scale < 0.05, (err, scale)
    return out


# ---------------------------------------------------------------------------
if __name__ == "__main__":
    key = jax.random.PRNGKey(0)
    kx, kp, kx2, kp2 = jax.random.split(key, 4)

    # Test 1: downsample path (batch=2, in=16, spatial=16, mid=8 -> out=32, s=2)
    N, IN_CHAN, H, W = 2, 16, 16, 16
    MID_CHAN, STRIDE = 8, 2
    x = jax.random.normal(kx, (N, IN_CHAN, H, W), jnp.float32)
    params = init_bottleneck_params(kp, IN_CHAN, MID_CHAN, STRIDE)
    out = _check(x, params, STRIDE)
    assert out.shape == (N, 4 * MID_CHAN, H // STRIDE, W // STRIDE), out.shape

    # Test 2: identity-shortcut path (in_chan == 4*mid_chan, stride=1)
    N2, IN2, H2, W2, MID2 = 1, 32, 8, 8, 8
    x2 = jax.random.normal(kx2, (N2, IN2, H2, W2), jnp.float32)
    params2 = init_bottleneck_params(kp2, IN2, MID2, stride=1)
    out2 = _check(x2, params2, 1)
    assert out2.shape == (N2, 4 * MID2, H2, W2), out2.shape

    print("KERNEL_OK")
</pallas_src>

<mosaic_0001>
module attributes {stable_mosaic.version = 11 : i64} {
  func.func @_mm_bias_act_kernel(%arg0: i32, %arg1: memref<512x128xbf16, #tpu.memory_space<vmem>>, %arg2: memref<128x128xbf16, #tpu.memory_space<vmem>>, %arg3: memref<1x128xf32, #tpu.memory_space<vmem>>, %arg4: memref<512x128xbf16, #tpu.memory_space<vmem>>) attributes {dimension_semantics = [#tpu.dimension_semantics<parallel>], iteration_bounds = array<i64: 1>, scalar_prefetch = 0 : i64, scratch_operands = 0 : i64, tpu.core_type = #tpu.core_type<tc>, window_params = [{transform_indices = @transform_0, window_bounds = array<i64: 512, 128>}, {pipeline_mode = #tpu.pipeline_mode<synchronous>, transform_indices = @transform_1, window_bounds = array<i64: 128, 128>}, {pipeline_mode = #tpu.pipeline_mode<synchronous>, transform_indices = @transform_2, window_bounds = array<i64: 1, 128>}, {transform_indices = @transform_3, window_bounds = array<i64: 512, 128>}]} {
    %c0 = arith.constant 0 : index
    %c0_0 = arith.constant 0 : index
    %0 = vector.load %arg1[%c0, %c0_0] : memref<512x128xbf16, #tpu.memory_space<vmem>>, vector<512x128xbf16>
    %c0_1 = arith.constant 0 : index
    %c0_2 = arith.constant 0 : index
    %1 = vector.load %arg2[%c0_1, %c0_2] : memref<128x128xbf16, #tpu.memory_space<vmem>>, vector<128x128xbf16>
    %cst = arith.constant dense<0.000000e+00> : vector<512x128xf32>
    %2 = tpu.matmul %0, %1, %cst {dimension_numbers = #tpu.dot_dimension_numbers<[1], [0], [0], [1], [0, 0, 1, 1], [], []>} : vector<512x128xbf16>, vector<128x128xbf16>, vector<512x128xf32> -> vector<512x128xf32>
    %c0_3 = arith.constant 0 : index
    %c0_4 = arith.constant 0 : index
    %3 = vector.load %arg3[%c0_3, %c0_4] : memref<1x128xf32, #tpu.memory_space<vmem>>, vector<1x128xf32>
    %4 = vector.broadcast %3 : vector<1x128xf32> to vector<512x128xf32>
    %5 = arith.addf %2, %4 : vector<512x128xf32>
    %cst_5 = arith.constant 0.000000e+00 : f32
    %6 = vector.broadcast %cst_5 : f32 to vector<512x128xf32>
    %7 = arith.maximumf %5, %6 : vector<512x128xf32>
    %8 = arith.truncf %7 : vector<512x128xf32> to vector<512x128xbf16>
    %c0_6 = arith.constant 0 : index
    %c0_7 = arith.constant 0 : index
    %9 = vector.load %arg4[%c0_6, %c0_7] : memref<512x128xbf16, #tpu.memory_space<vmem>>, vector<512x128xbf16>
    tpu.vector_store %arg4[%c0_6, %c0_7], %8 {strides = array<i32>} : memref<512x128xbf16, #tpu.memory_space<vmem>>, vector<512x128xbf16>,
    return
  }
  func.func @transform_0(%arg0: i32) -> (i32, i32) {
    %c0_i32 = arith.constant 0 : i32
    %c0_i32_0 = arith.constant 0 : i32
    return %arg0, %c0_i32 : i32, i32
  }
  func.func @transform_1(%arg0: i32) -> (i32, i32) {
    %c0_i32 = arith.constant 0 : i32
    %c0_i32_0 = arith.constant 0 : i32
    %c0_i32_1 = arith.constant 0 : i32
    return %c0_i32, %c0_i32_0 : i32, i32
  }
  func.func @transform_2(%arg0: i32) -> (i32, i32) {
    %c0_i32 = arith.constant 0 : i32
    %c0_i32_0 = arith.constant 0 : i32
    %c0_i32_1 = arith.constant 0 : i32
    return %c0_i32, %c0_i32_0 : i32, i32
  }
  func.func @transform_3(%arg0: i32) -> (i32, i32) {
    %c0_i32 = arith.constant 0 : i32
    %c0_i32_0 = arith.constant 0 : i32
    return %arg0, %c0_i32 : i32, i32
  }
}

module attributes {stable_mosaic.version = 11 : i64} {
  func.func @_conv3x3_bias_relu_kernel(%arg0: i32, %arg1: i32, %arg2: memref<1x576x128xbf16, #tpu.memory_space<vmem>>, %arg3: memref<9x128x128xbf16, #tpu.memory_space<vmem>>, %arg4: memref<1x128xf32, #tpu.memory_space<vmem>>, %arg5: memref<1x8x8x128xbf16, #tpu.memory_space<vmem>>) attributes {dimension_semantics = [#tpu.dimension_semantics<parallel>, #tpu.dimension_semantics<parallel>], iteration_bounds = array<i64: 2, 1>, scalar_prefetch = 0 : i64, scratch_operands = 0 : i64, tpu.core_type = #tpu.core_type<tc>, window_params = [{transform_indices = @transform_0, window_bounds = array<i64: 1, 576, 128>}, {pipeline_mode = #tpu.pipeline_mode<synchronous>, transform_indices = @transform_1, window_bounds = array<i64: 9, 128, 128>}, {pipeline_mode = #tpu.pipeline_mode<synchronous>, transform_indices = @transform_2, window_bounds = array<i64: 1, 128>}, {transform_indices = @transform_3, window_bounds = array<i64: 1, 8, 8, 128>}]} {
    %c128_i32 = arith.constant 128 : i32
    %0 = arith.muli %arg1, %c128_i32 : i32
    %1 = tpu.assume_multiple %0, 8 : i32
    %c0_i32 = arith.constant 0 : i32
    %2 = arith.addi %c0_i32, %1 : i32
    %3 = tpu.assume_multiple %2, 8 : i32
    %c0 = arith.constant 0 : index
    %4 = arith.index_cast %3 : i32 to index
    %c0_0 = arith.constant 0 : index
    %5 = vector.load %arg2[%c0, %4, %c0_0] : memref<1x576x128xbf16, #tpu.memory_space<vmem>>, vector<1x144x128xbf16>
    %6 = vector.shape_cast %5 : vector<1x144x128xbf16> to vector<144x128xbf16>
    %c0_1 = arith.constant 0 : index
    %c0_2 = arith.constant 0 : index
    %c0_3 = arith.constant 0 : index
    %7 = vector.load %arg3[%c0_1, %c0_2, %c0_3] : memref<9x128x128xbf16, #tpu.memory_space<vmem>>, vector<1x128x128xbf16>
    %8 = vector.shape_cast %7 : vector<1x128x128xbf16> to vector<128x128xbf16>
    %cst = arith.constant dense<0.000000e+00> : vector<144x128xf32>
    %9 = tpu.matmul %6, %8, %cst {dimension_numbers = #tpu.dot_dimension_numbers<[1], [0], [0], [1], [0, 0, 1, 1], [], []>} : vector<144x128xbf16>, vector<128x128xbf16>, vector<144x128xf32> -> vector<144x128xf32>
    %10 = vector.shape_cast %9 : vector<144x128xf32> to vector<9x16x128xf32>
    %11 = vector.extract_strided_slice %10 {offsets = [0, 0, 0], sizes = [8, 8, 128], strides = [1, 1, 1]} : vector<9x16x128xf32> to vector<8x8x128xf32>
    %c144_i32 = arith.constant 144 : i32
    %12 = arith.addi %c144_i32, %1 : i32
    %13 = tpu.assume_multiple %12, 8 : i32
    %c0_4 = arith.constant 0 : index
    %14 = arith.index_cast %13 : i32 to index
    %c0_5 = arith.constant 0 : index
    %15 = vector.load %arg2[%c0_4, %14, %c0_5] : memref<1x576x128xbf16, #tpu.memory_space<vmem>>, vector<1x144x128xbf16>
    %16 = vector.shape_cast %15 : vector<1x144x128xbf16> to vector<144x128xbf16>
    %c1 = arith.constant 1 : index
    %c0_6 = arith.constant 0 : index
    %c0_7 = arith.constant 0 : index
    %17 = vector.load %arg3[%c1, %c0_6, %c0_7] : memref<9x128x128xbf16, #tpu.memory_space<vmem>>, vector<1x128x128xbf16>
    %18 = vector.shape_cast %17 : vector<1x128x128xbf16> to vector<128x128xbf16>
    %cst_8 = arith.constant dense<0.000000e+00> : vector<144x128xf32>
    %19 = tpu.matmul %16, %18, %cst_8 {dimension_numbers = #tpu.dot_dimension_numbers<[1], [0], [0], [1], [0, 0, 1, 1], [], []>} : vector<144x128xbf16>, vector<128x128xbf16>, vector<144x128xf32> -> vector<144x128xf32>
    %20 = vector.shape_cast %19 : vector<144x128xf32> to vector<9x16x128xf32>
    %21 = vector.extract_strided_slice %20 {offsets = [0, 0, 0], sizes = [8, 8, 128], strides = [1, 1, 1]} : vector<9x16x128xf32> to vector<8x8x128xf32>
    %22 = arith.addf %11, %21 : vector<8x8x128xf32>
    %c0_i32_9 = arith.constant 0 : i32
    %23 = arith.addi %c0_i32_9, %1 : i32
    %24 = tpu.assume_multiple %23, 8 : i32
    %c0_10 = arith.constant 0 : index
    %25 = arith.index_cast %24 : i32 to index
    %c0_11 = arith.constant 0 : index
    %26 = vector.load %arg2[%c0_10, %25, %c0_11] : memref<1x576x128xbf16, #tpu.memory_space<vmem>>, vector<1x144x128xbf16>
    %27 = vector.shape_cast %26 : vector<1x144x128xbf16> to vector<144x128xbf16>
    %c2 = arith.constant 2 : index
    %c0_12 = arith.constant 0 : index
    %c0_13 = arith.constant 0 : index
    %28 = vector.load %arg3[%c2, %c0_12, %c0_13] : memref<9x128x128xbf16, #tpu.memory_space<vmem>>, vector<1x128x128xbf16>
    %29 = vector.shape_cast %28 : vector<1x128x128xbf16> to vector<128x128xbf16>
    %cst_14 = arith.constant dense<0.000000e+00> : vector<144x128xf32>
    %30 = tpu.matmul %27, %29, %cst_14 {dimension_numbers = #tpu.dot_dimension_numbers<[1], [0], [0], [1], [0, 0, 1, 1], [], []>} : vector<144x128xbf16>, vector<128x128xbf16>, vector<144x128xf32> -> vector<144x128xf32>
    %31 = vector.shape_cast %30 : vector<144x128xf32> to vector<9x16x128xf32>
    %32 = vector.extract_strided_slice %31 {offsets = [0, 1, 0], sizes = [8, 8, 128], strides = [1, 1, 1]} : vector<9x16x128xf32> to vector<8x8x128xf32>
    %33 = arith.addf %22, %32 : vector<8x8x128xf32>
    %c288_i32 = arith.constant 288 : i32
    %34 = arith.addi %c288_i32, %1 : i32
    %35 = tpu.assume_multiple %34, 8 : i32
    %c0_15 = arith.constant 0 : index
    %36 = arith.index_cast %35 : i32 to index
    %c0_16 = arith.constant 0 : index
    %37 = vector.load %arg2[%c0_15, %36, %c0_16] : memref<1x576x128xbf16, #tpu.memory_space<vmem>>, vector<1x144x128xbf16>
    %38 = vector.shape_cast %37 : vector<1x144x128xbf16> to vector<144x128xbf16>
    %c3 = arith.constant 3 : index
    %c0_17 = arith.constant 0 : index
    %c0_18 = arith.constant 0 : index
    %39 = vector.load %arg3[%c3, %c0_17, %c0_18] : memref<9x128x128xbf16, #tpu.memory_space<vmem>>, vector<1x128x128xbf16>
    %40 = vector.shape_cast %39 : vector<1x128x128xbf16> to vector<128x128xbf16>
    %cst_19 = arith.constant dense<0.000000e+00> : vector<144x128xf32>
    %41 = tpu.matmul %38, %40, %cst_19 {dimension_numbers = #tpu.dot_dimension_numbers<[1], [0], [0], [1], [0, 0, 1, 1], [], []>} : vector<144x128xbf16>, vector<128x128xbf16>, vector<144x128xf32> -> vector<144x128xf32>
    %42 = vector.shape_cast %41 : vector<144x128xf32> to vector<9x16x128xf32>
    %43 = vector.extract_strided_slice %42 {offsets = [0, 0, 0], sizes = [8, 8, 128], strides = [1, 1, 1]} : vector<9x16x128xf32> to vector<8x8x128xf32>
    %44 = arith.addf %33, %43 : vector<8x8x128xf32>
    %c432_i32 = arith.constant 432 : i32
    %45 = arith.addi %c432_i32, %1 : i32
    %46 = tpu.assume_multiple %45, 8 : i32
    %c0_20 = arith.constant 0 : index
    %47 = arith.index_cast %46 : i32 to index
    %c0_21 = arith.constant 0 : index
    %48 = vector.load %arg2[%c0_20, %47, %c0_21] : memref<1x576x128xbf16, #tpu.memory_space<vmem>>, vector<1x144x128xbf16>
    %49 = vector.shape_cast %48 : vector<1x144x128xbf16> to vector<144x128xbf16>
    %c4 = arith.constant 4 : index
    %c0_22 = arith.constant 0 : index
    %c0_23 = arith.constant 0 : index
    %50 = vector.load %arg3[%c4, %c0_22, %c0_23] : memref<9x128x128xbf16, #tpu.memory_space<vmem>>, vector<1x128x128xbf16>
    %51 = vector.shape_cast %50 : vector<1x128x128xbf16> to vector<128x128xbf16>
    %cst_24 = arith.constant dense<0.000000e+00> : vector<144x128xf32>
    %52 = tpu.matmul %49, %51, %cst_24 {dimension_numbers = #tpu.dot_dimension_numbers<[1], [0], [0], [1], [0, 0, 1, 1], [], []>} : vector<144x128xbf16>, vector<128x128xbf16>, vector<144x128xf32> -> vector<144x128xf32>
    %53 = vector.shape_cast %52 : vector<144x128xf32> to vector<9x16x128xf32>
    %54 = vector.extract_strided_slice %53 {offsets = [0, 0, 0], sizes = [8, 8, 128], strides = [1, 1, 1]} : vector<9x16x128xf32> to vector<8x8x128xf32>
    %55 = arith.addf %44, %54 : vector<8x8x128xf32>
    %c288_i32_25 = arith.constant 288 : i32
    %56 = arith.addi %c288_i32_25, %1 : i32
    %57 = tpu.assume_multiple %56, 8 : i32
    %c0_26 = arith.constant 0 : index
    %58 = arith.index_cast %57 : i32 to index
    %c0_27 = arith.constant 0 : index
    %59 = vector.load %arg2[%c0_26, %58, %c0_27] : memref<1x576x128xbf16, #tpu.memory_space<vmem>>, vector<1x144x128xbf16>
    %60 = vector.shape_cast %59 : vector<1x144x128xbf16> to vector<144x128xbf16>
    %c5 = arith.constant 5 : index
    %c0_28 = arith.constant 0 : index
    %c0_29 = arith.constant 0 : index
    %61 = vector.load %arg3[%c5, %c0_28, %c0_29] : memref<9x128x128xbf16, #tpu.memory_space<vmem>>, vector<1x128x128xbf16>
    %62 = vector.shape_cast %61 : vector<1x128x128xbf16> to vector<128x128xbf16>
    %cst_30 = arith.constant dense<0.000000e+00> : vector<144x128xf32>
    %63 = tpu.matmul %60, %62, %cst_30 {dimension_numbers = #tpu.dot_dimension_numbers<[1], [0], [0], [1], [0, 0, 1, 1], [], []>} : vector<144x128xbf16>, vector<128x128xbf16>, vector<144x128xf32> -> vector<144x128xf32>
    %64 = vector.shape_cast %63 : vector<144x128xf32> to vector<9x16x128xf32>
    %65 = vector.extract_strided_slice %64 {offsets = [0, 1, 0], sizes = [8, 8, 128], strides = [1, 1, 1]} : vector<9x16x128xf32> to vector<8x8x128xf32>
    %66 = arith.addf %55, %65 : vector<8x8x128xf32>
    %c0_i32_31 = arith.constant 0 : i32
    %67 = arith.addi %c0_i32_31, %1 : i32
    %68 = tpu.assume_multiple %67, 8 : i32
    %c0_32 = arith.constant 0 : index
    %69 = arith.index_cast %68 : i32 to index
    %c0_33 = arith.constant 0 : index
    %70 = vector.load %arg2[%c0_32, %69, %c0_33] : memref<1x576x128xbf16, #tpu.memory_space<vmem>>, vector<1x144x128xbf16>
    %71 = vector.shape_cast %70 : vector<1x144x128xbf16> to vector<144x128xbf16>
    %c6 = arith.constant 6 : index
    %c0_34 = arith.constant 0 : index
    %c0_35 = arith.constant 0 : index
    %72 = vector.load %arg3[%c6, %c0_34, %c0_35] : memref<9x128x128xbf16, #tpu.memory_space<vmem>>, vector<1x128x128xbf16>
    %73 = vector.shape_cast %72 : vector<1x128x128xbf16> to vector<128x128xbf16>
    %cst_36 = arith.constant dense<0.000000e+00> : vector<144x128xf32>
    %74 = tpu.matmul %71, %73, %cst_36 {dimension_numbers = #tpu.dot_dimension_numbers<[1], [0], [0], [1], [0, 0, 1, 1], [], []>} : vector<144x128xbf16>, vector<128x128xbf16>, vector<144x128xf32> -> vector<144x128xf32>
    %75 = vector.shape_cast %74 : vector<144x128xf32> to vector<9x16x128xf32>
    %76 = vector.extract_strided_slice %75 {offsets = [1, 0, 0], sizes = [8, 8, 128], strides = [1, 1, 1]} : vector<9x16x128xf32> to vector<8x8x128xf32>
    %77 = arith.addf %66, %76 : vector<8x8x128xf32>
    %c144_i32_37 = arith.constant 144 : i32
    %78 = arith.addi %c144_i32_37, %1 : i32
    %79 = tpu.assume_multiple %78, 8 : i32
    %c0_38 = arith.constant 0 : index
    %80 = arith.index_cast %79 : i32 to index
    %c0_39 = arith.constant 0 : index
    %81 = vector.load %arg2[%c0_38, %80, %c0_39] : memref<1x576x128xbf16, #tpu.memory_space<vmem>>, vector<1x144x128xbf16>
    %82 = vector.shape_cast %81 : vector<1x144x128xbf16> to vector<144x128xbf16>
    %c7 = arith.constant 7 : index
    %c0_40 = arith.constant 0 : index
    %c0_41 = arith.constant 0 : index
    %83 = vector.load %arg3[%c7, %c0_40, %c0_41] : memref<9x128x128xbf16, #tpu.memory_space<vmem>>, vector<1x128x128xbf16>
    %84 = vector.shape_cast %83 : vector<1x128x128xbf16> to vector<128x128xbf16>
    %cst_42 = arith.constant dense<0.000000e+00> : vector<144x128xf32>
    %85 = tpu.matmul %82, %84, %cst_42 {dimension_numbers = #tpu.dot_dimension_numbers<[1], [0], [0], [1], [0, 0, 1, 1], [], []>} : vector<144x128xbf16>, vector<128x128xbf16>, vector<144x128xf32> -> vector<144x128xf32>
    %86 = vector.shape_cast %85 : vector<144x128xf32> to vector<9x16x128xf32>
    %87 = vector.extract_strided_slice %86 {offsets = [1, 0, 0], sizes = [8, 8, 128], strides = [1, 1, 1]} : vector<9x16x128xf32> to vector<8x8x128xf32>
    %88 = arith.addf %77, %87 : vector<8x8x128xf32>
    %c0_i32_43 = arith.constant 0 : i32
    %89 = arith.addi %c0_i32_43, %1 : i32
    %90 = tpu.assume_multiple %89, 8 : i32
    %c0_44 = arith.constant 0 : index
    %91 = arith.index_cast %90 : i32 to index
    %c0_45 = arith.constant 0 : index
    %92 = vector.load %arg2[%c0_44, %91, %c0_45] : memref<1x576x128xbf16, #tpu.memory_space<vmem>>, vector<1x144x128xbf16>
    %93 = vector.shape_cast %92 : vector<1x144x128xbf16> to vector<144x128xbf16>
    %c8 = arith.constant 8 : index
    %c0_46 = arith.constant 0 : index
    %c0_47 = arith.constant 0 : index
    %94 = vector.load %arg3[%c8, %c0_46, %c0_47] : memref<9x128x128xbf16, #tpu.memory_space<vmem>>, vector<1x128x128xbf16>
    %95 = vector.shape_cast %94 : vector<1x128x128xbf16> to vector<128x128xbf16>
    %cst_48 = arith.constant dense<0.000000e+00> : vector<144x128xf32>
    %96 = tpu.matmul %93, %95, %cst_48 {dimension_numbers = #tpu.dot_dimension_numbers<[1], [0], [0], [1], [0, 0, 1, 1], [], []>} : vector<144x128xbf16>, vector<128x128xbf16>, vector<144x128xf32> -> vector<144x128xf32>
    %97 = vector.shape_cast %96 : vector<144x128xf32> to vector<9x16x128xf32>
    %98 = vector.extract_strided_slice %97 {offsets = [1, 1, 0], sizes = [8, 8, 128], strides = [1, 1, 1]} : vector<9x16x128xf32> to vector<8x8x128xf32>
    %99 = arith.addf %88, %98 : vector<8x8x128xf32>
    %c0_49 = arith.constant 0 : index
    %c0_50 = arith.constant 0 : index
    %100 = vector.load %arg4[%c0_49, %c0_50] : memref<1x128xf32, #tpu.memory_space<vmem>>, vector<1x128xf32>
    %101 = vector.shape_cast %100 : vector<1x128xf32> to vector<1x1x128xf32>
    %102 = vector.broadcast %101 : vector<1x1x128xf32> to vector<8x8x128xf32>
    %103 = arith.addf %99, %102 : vector<8x8x128xf32>
    %cst_51 = arith.constant 0.000000e+00 : f32
    %104 = vector.broadcast %cst_51 : f32 to vector<8x8x128xf32>
    %105 = arith.maximumf %103, %104 : vector<8x8x128xf32>
    %106 = arith.truncf %105 : vector<8x8x128xf32> to vector<8x8x128xbf16>
    %c0_52 = arith.constant 0 : index
    %c0_53 = arith.constant 0 : index
    %c0_54 = arith.constant 0 : index
    %c0_55 = arith.constant 0 : index
    %107 = vector.load %arg5[%c0_52, %c0_53, %c0_54, %c0_55] : memref<1x8x8x128xbf16, #tpu.memory_space<vmem>>, vector<1x8x8x128xbf16>
    %108 = vector.shape_cast %107 : vector<1x8x8x128xbf16> to vector<8x8x128xbf16>
    %109 = vector.shape_cast %106 : vector<8x8x128xbf16> to vector<1x8x8x128xbf16>
    tpu.vector_store %arg5[%c0_52, %c0_53, %c0_54, %c0_55], %109 {strides = array<i32>} : memref<1x8x8x128xbf16, #tpu.memory_space<vmem>>, vector<1x8x8x128xbf16>,
    return
  }
  func.func @transform_0(%arg0: i32, %arg1: i32) -> (i32, i32, i32) {
    %c0_i32 = arith.constant 0 : i32
    %c0_i32_0 = arith.constant 0 : i32
    %c0_i32_1 = arith.constant 0 : i32
    return %arg0, %c0_i32, %c0_i32_0 : i32, i32, i32
  }
  func.func @transform_1(%arg0: i32, %arg1: i32) -> (i32, i32, i32) {
    %c0_i32 = arith.constant 0 : i32
    %c0_i32_0 = arith.constant 0 : i32
    %c0_i32_1 = arith.constant 0 : i32
    %c0_i32_2 = arith.constant 0 : i32
    return %c0_i32, %c0_i32_0, %c0_i32_1 : i32, i32, i32
  }
  func.func @transform_2(%arg0: i32, %arg1: i32) -> (i32, i32) {
    %c0_i32 = arith.constant 0 : i32
    %c0_i32_0 = arith.constant 0 : i32
    %c0_i32_1 = arith.constant 0 : i32
    return %c0_i32, %c0_i32_0 : i32, i32
  }
  func.func @transform_3(%arg0: i32, %arg1: i32) -> (i32, i32, i32, i32) {
    %c0_i32 = arith.constant 0 : i32
    %c0_i32_0 = arith.constant 0 : i32
    %c0_i32_1 = arith.constant 0 : i32
    return %arg0, %arg1, %c0_i32, %c0_i32_0 : i32, i32, i32, i32
  }
}

module attributes {stable_mosaic.version = 11 : i64} {
  func.func @_mm_dual_bias_relu_kernel(%arg0: i32, %arg1: memref<128x128xbf16, #tpu.memory_space<vmem>>, %arg2: memref<128x128xbf16, #tpu.memory_space<vmem>>, %arg3: memref<128x128xbf16, #tpu.memory_space<vmem>>, %arg4: memref<128x128xbf16, #tpu.memory_space<vmem>>, %arg5: memref<1x128xf32, #tpu.memory_space<vmem>>, %arg6: memref<128x128xbf16, #tpu.memory_space<vmem>>) attributes {dimension_semantics = [#tpu.dimension_semantics<parallel>], iteration_bounds = array<i64: 1>, scalar_prefetch = 0 : i64, scratch_operands = 0 : i64, tpu.core_type = #tpu.core_type<tc>, window_params = [{transform_indices = @transform_0, window_bounds = array<i64: 128, 128>}, {pipeline_mode = #tpu.pipeline_mode<synchronous>, transform_indices = @transform_1, window_bounds = array<i64: 128, 128>}, {transform_indices = @transform_2, window_bounds = array<i64: 128, 128>}, {pipeline_mode = #tpu.pipeline_mode<synchronous>, transform_indices = @transform_3, window_bounds = array<i64: 128, 128>}, {pipeline_mode = #tpu.pipeline_mode<synchronous>, transform_indices = @transform_4, window_bounds = array<i64: 1, 128>}, {transform_indices = @transform_5, window_bounds = array<i64: 128, 128>}]} {
    %c0 = arith.constant 0 : index
    %c0_0 = arith.constant 0 : index
    %0 = vector.load %arg1[%c0, %c0_0] : memref<128x128xbf16, #tpu.memory_space<vmem>>, vector<128x128xbf16>
    %c0_1 = arith.constant 0 : index
    %c0_2 = arith.constant 0 : index
    %1 = vector.load %arg2[%c0_1, %c0_2] : memref<128x128xbf16, #tpu.memory_space<vmem>>, vector<128x128xbf16>
    %cst = arith.constant dense<0.000000e+00> : vector<128x128xf32>
    %2 = tpu.matmul %0, %1, %cst {dimension_numbers = #tpu.dot_dimension_numbers<[1], [0], [0], [1], [0, 0, 1, 1], [], []>} : vector<128x128xbf16>, vector<128x128xbf16>, vector<128x128xf32> -> vector<128x128xf32>
    %c0_3 = arith.constant 0 : index
    %c0_4 = arith.constant 0 : index
    %3 = vector.load %arg3[%c0_3, %c0_4] : memref<128x128xbf16, #tpu.memory_space<vmem>>, vector<128x128xbf16>
    %c0_5 = arith.constant 0 : index
    %c0_6 = arith.constant 0 : index
    %4 = vector.load %arg4[%c0_5, %c0_6] : memref<128x128xbf16, #tpu.memory_space<vmem>>, vector<128x128xbf16>
    %cst_7 = arith.constant dense<0.000000e+00> : vector<128x128xf32>
    %5 = tpu.matmul %3, %4, %cst_7 {dimension_numbers = #tpu.dot_dimension_numbers<[1], [0], [0], [1], [0, 0, 1, 1], [], []>} : vector<128x128xbf16>, vector<128x128xbf16>, vector<128x128xf32> -> vector<128x128xf32>
    %6 = arith.addf %2, %5 : vector<128x128xf32>
    %c0_8 = arith.constant 0 : index
    %c0_9 = arith.constant 0 : index
    %7 = vector.load %arg5[%c0_8, %c0_9] : memref<1x128xf32, #tpu.memory_space<vmem>>, vector<1x128xf32>
    %8 = vector.broadcast %7 : vector<1x128xf32> to vector<128x128xf32>
    %9 = arith.addf %6, %8 : vector<128x128xf32>
    %cst_10 = arith.constant 0.000000e+00 : f32
    %10 = vector.broadcast %cst_10 : f32 to vector<128x128xf32>
    %11 = arith.maximumf %9, %10 : vector<128x128xf32>
    %12 = arith.truncf %11 : vector<128x128xf32> to vector<128x128xbf16>
    %c0_11 = arith.constant 0 : index
    %c0_12 = arith.constant 0 : index
    %13 = vector.load %arg6[%c0_11, %c0_12] : memref<128x128xbf16, #tpu.memory_space<vmem>>, vector<128x128xbf16>
    tpu.vector_store %arg6[%c0_11, %c0_12], %12 {strides = array<i32>} : memref<128x128xbf16, #tpu.memory_space<vmem>>, vector<128x128xbf16>,
    return
  }
  func.func @transform_0(%arg0: i32) -> (i32, i32) {
    %c0_i32 = arith.constant 0 : i32
    %c0_i32_0 = arith.constant 0 : i32
    return %arg0, %c0_i32 : i32, i32
  }
  func.func @transform_1(%arg0: i32) -> (i32, i32) {
    %c0_i32 = arith.constant 0 : i32
    %c0_i32_0 = arith.constant 0 : i32
    %c0_i32_1 = arith.constant 0 : i32
    return %c0_i32, %c0_i32_0 : i32, i32
  }
  func.func @transform_2(%arg0: i32) -> (i32, i32) {
    %c0_i32 = arith.constant 0 : i32
    %c0_i32_0 = arith.constant 0 : i32
    return %arg0, %c0_i32 : i32, i32
  }
  func.func @transform_3(%arg0: i32) -> (i32, i32) {
    %c0_i32 = arith.constant 0 : i32
    %c0_i32_0 = arith.constant 0 : i32
    %c0_i32_1 = arith.constant 0 : i32
    return %c0_i32, %c0_i32_0 : i32, i32
  }
  func.func @transform_4(%arg0: i32) -> (i32, i32) {
    %c0_i32 = arith.constant 0 : i32
    %c0_i32_0 = arith.constant 0 : i32
    %c0_i32_1 = arith.constant 0 : i32
    return %c0_i32, %c0_i32_0 : i32, i32
  }
  func.func @transform_5(%arg0: i32) -> (i32, i32) {
    %c0_i32 = arith.constant 0 : i32
    %c0_i32_0 = arith.constant 0 : i32
    return %arg0, %c0_i32 : i32, i32
  }
}

</mosaic_0001>

<llo_original>
// kernel: bottleneck_forward.3
$region0: #{bottleneck_forward.3}
  #allocation0 [shape = 'u32[]', space=smem, size = 0x4, offset = 0x4, fixed_abs, tag = 'smem constant byte address 0x4 - core index']
  #allocation1 [shape = 'u32[72,128]{1,0:T(1,128)}', space=vmem, size = 0x9000, scoped, tag = 'internal scratch']
  %s0 = inlined_call_operand.vmem [shape: bf16[512,128], index: 0, kind: input, shape index: {}]
  %s1 = inlined_call_operand.vmem [shape: bf16[128,128], index: 1, kind: input, shape index: {}]
  %s2 = inlined_call_operand.vmem [shape: f32[1,128], index: 2, kind: input, shape index: {}]
  %s3 = inlined_call_operand.vmem [shape: bf16[512,128], index: 3, kind: output, shape index: {}]
  %s4 = sld [smem:[#allocation0]]
  $region22: #{bottleneck_forward.3} parent=0
    _
  %s6 = ssub.s32 1, %s4
  %s7 = scalar_select 0, %s6, %s4
  // Predicated region
  $region2: #{bottleneck_forward.3} parent=0 // pred_check
    _
  $region3: #{bottleneck_forward.3} parent=0 // pred_check_branch
    %9 = sbr.rel (0) target = $region5
  $region4: #{bottleneck_forward.3} parent=0 // pred_region
    _
  $region5: #{bottleneck_forward.3} parent=0 // pred_fallthru
    _
  // Predicated region
  $region6: #{bottleneck_forward.3} parent=0 // pred_check
    _
  $region7: #{bottleneck_forward.3} parent=0 // pred_check_branch
    %11 = sbr.rel (0) target = $region9
  $region8: #{bottleneck_forward.3} parent=0 // pred_region
    _
  $region9: #{bottleneck_forward.3} parent=0 // pred_fallthru
    _
  // Predicated region
  $region10: #{bottleneck_forward.3} parent=0 // pred_check
    _
  $region11: #{bottleneck_forward.3} parent=0 // pred_check_branch
    %13 = sbr.rel (0) target = $region13
  $region12: #{bottleneck_forward.3} parent=0 // pred_region
    _
  $region13: #{bottleneck_forward.3} parent=0 // pred_fallthru
    _
  %v14 = vld [vmem:[%s0] sm:$0xf]
  %v15 = vld [vmem:[%s0 + $0x4] sm:$0xf]
  %v16 = vld [vmem:[%s0 + $0x8] sm:$0xf]
  %v17 = vld [vmem:[%s0 + $0xc] sm:$0xf]
  %v18 = vld [vmem:[%s0 + $0x10] sm:$0xf]
  %v19 = vld [vmem:[%s0 + $0x14] sm:$0xf]
  %v20 = vld [vmem:[%s0 + $0x18] sm:$0xf]
  %v21 = vld [vmem:[%s0 + $0x1c] sm:$0xf]
  %v22 = vld [vmem:[%s0 + $0x20] sm:$0xf]
  %v23 = vld [vmem:[%s0 + $0x24] sm:$0xf]
  %v24 = vld [vmem:[%s0 + $0x28] sm:$0xf]
  %v25 = vld [vmem:[%s0 + $0x2c] sm:$0xf]
  %v26 = vld [vmem:[%s0 + $0x30] sm:$0xf]
  %v27 = vld [vmem:[%s0 + $0x34] sm:$0xf]
  %v28 = vld [vmem:[%s0 + $0x38] sm:$0xf]
  %v29 = vld [vmem:[%s0 + $0x3c] sm:$0xf]
  %v30 = vld [vmem:[%s0 + $0x40] sm:$0xf]
  %v31 = vld [vmem:[%s0 + $0x44] sm:$0xf]
  %v32 = vld [vmem:[%s0 + $0x48] sm:$0xf]
  %v33 = vld [vmem:[%s0 + $0x4c] sm:$0xf]
  %v34 = vld [vmem:[%s0 + $0x50] sm:$0xf]
  %v35 = vld [vmem:[%s0 + $0x54] sm:$0xf]
  %v36 = vld [vmem:[%s0 + $0x58] sm:$0xf]
  %v37 = vld [vmem:[%s0 + $0x5c] sm:$0xf]
  %v38 = vld [vmem:[%s0 + $0x60] sm:$0xf]
  %v39 = vld [vmem:[%s0 + $0x64] sm:$0xf]
  %v40 = vld [vmem:[%s0 + $0x68] sm:$0xf]
  %v41 = vld [vmem:[%s0 + $0x6c] sm:$0xf]
  %v42 = vld [vmem:[%s0 + $0x70] sm:$0xf]
  %v43 = vld [vmem:[%s0 + $0x74] sm:$0xf]
  %v44 = vld [vmem:[%s0 + $0x78] sm:$0xf]
  %v45 = vld [vmem:[%s0 + $0x7c] sm:$0xf]
  %v46 = vld [vmem:[%s0 + $0x80] sm:$0xf]
  %v47 = vld [vmem:[%s0 + $0x84] sm:$0xf]
  %v48 = vld [vmem:[%s0 + $0x88] sm:$0xf]
  %v49 = vld [vmem:[%s0 + $0x8c] sm:$0xf]
  %v50 = vld [vmem:[%s0 + $0x90] sm:$0xf]
  %v51 = vld [vmem:[%s0 + $0x94] sm:$0xf]
  %v52 = vld [vmem:[%s0 + $0x98] sm:$0xf]
  %v53 = vld [vmem:[%s0 + $0x9c] sm:$0xf]
  %v54 = vld [vmem:[%s0 + $0xa0] sm:$0xf]
  %v55 = vld [vmem:[%s0 + $0xa4] sm:$0xf]
  %v56 = vld [vmem:[%s0 + $0xa8] sm:$0xf]
  %v57 = vld [vmem:[%s0 + $0xac] sm:$0xf]
  %v58 = vld [vmem:[%s0 + $0xb0] sm:$0xf]
  %v59 = vld [vmem:[%s0 + $0xb4] sm:$0xf]
  %v60 = vld [vmem:[%s0 + $0xb8] sm:$0xf]
  %v61 = vld [vmem:[%s0 + $0xbc] sm:$0xf]
  %v62 = vld [vmem:[%s0 + $0xc0] sm:$0xf]
  %v63 = vld [vmem:[%s0 + $0xc4] sm:$0xf]
  %v64 = vld [vmem:[%s0 + $0xc8] sm:$0xf]
  %v65 = vld [vmem:[%s0 + $0xcc] sm:$0xf]
  %v66 = vld [vmem:[%s0 + $0xd0] sm:$0xf]
  %v67 = vld [vmem:[%s0 + $0xd4] sm:$0xf]
  %v68 = vld [vmem:[%s0 + $0xd8] sm:$0xf]
  %v69 = vld [vmem:[%s0 + $0xdc] sm:$0xf]
  %v70 = vld [vmem:[%s0 + $0xe0] sm:$0xf]
  %v71 = vld [vmem:[%s0 + $0xe4] sm:$0xf]
  %v72 = vld [vmem:[%s0 + $0xe8] sm:$0xf]
  %v73 = vld [vmem:[%s0 + $0xec] sm:$0xf]
  %v74 = vld [vmem:[%s0 + $0xf0] sm:$0xf]
  %v75 = vld [vmem:[%s0 + $0xf4] sm:$0xf]
  %v76 = vld [vmem:[%s0 + $0xf8] sm:$0xf]
  %v77 = vld [vmem:[%s0 + $0xfc] sm:$0xf]
  %v78 = vld [vmem:[%s1] sm:$0xf]
  %v79 = vld [vmem:[%s1 + $0x4] sm:$0xf]
  %v80 = vld [vmem:[%s1 + $0x8] sm:$0xf]
  %v81 = vld [vmem:[%s1 + $0xc] sm:$0xf]
  %v82 = vld [vmem:[%s1 + $0x10] sm:$0xf]
  %v83 = vld [vmem:[%s1 + $0x14] sm:$0xf]
  %v84 = vld [vmem:[%s1 + $0x18] sm:$0xf]
  %v85 = vld [vmem:[%s1 + $0x1c] sm:$0xf]
  %v86 = vld [vmem:[%s1 + $0x20] sm:$0xf]
  %v87 = vld [vmem:[%s1 + $0x24] sm:$0xf]
  %v88 = vld [vmem:[%s1 + $0x28] sm:$0xf]
  %v89 = vld [vmem:[%s1 + $0x2c] sm:$0xf]
  %v90 = vld [vmem:[%s1 + $0x30] sm:$0xf]
  %v91 = vld [vmem:[%s1 + $0x34] sm:$0xf]
  %v92 = vld [vmem:[%s1 + $0x38] sm:$0xf]
  %v93 = vld [vmem:[%s1 + $0x3c] sm:$0xf]
  %v94 = vld [vmem:[%s2] sm:$0x1]
  %v96 = vperm.slane %v94, 0
  %v162 = vunpack.c.l.b16 %v14
  %v163 = vunpack.c.l.b16 %v15
  %v164 = vunpack.c.l.b16 %v16
  %v165 = vunpack.c.l.b16 %v17
  %v166 = vunpack.c.l.b16 %v18
  %v167 = vunpack.c.l.b16 %v19
  %v168 = vunpack.c.l.b16 %v20
  %v169 = vunpack.c.l.b16 %v21
  %v170 = vunpack.c.l.b16 %v22
  %v171 = vunpack.c.l.b16 %v23
  %v172 = vunpack.c.l.b16 %v24
  %v173 = vunpack.c.l.b16 %v25
  %v174 = vunpack.c.l.b16 %v26
  %v175 = vunpack.c.l.b16 %v27
  %v176 = vunpack.c.l.b16 %v28
  %v177 = vunpack.c.l.b16 %v29
  %v178 = vunpack.c.l.b16 %v30
  %v179 = vunpack.c.l.b16 %v31
  %v180 = vunpack.c.l.b16 %v32
  %v181 = vunpack.c.l.b16 %v33
  %v182 = vunpack.c.l.b16 %v34
  %v183 = vunpack.c.l.b16 %v35
  %v184 = vunpack.c.l.b16 %v36
  %v185 = vunpack.c.l.b16 %v37
  %v186 = vunpack.c.l.b16 %v38
  %v187 = vunpack.c.l.b16 %v39
  %v188 = vunpack.c.l.b16 %v40
  %v189 = vunpack.c.l.b16 %v41
  %v190 = vunpack.c.l.b16 %v42
  %v191 = vunpack.c.l.b16 %v43
  %v192 = vunpack.c.l.b16 %v44
  %v193 = vunpack.c.l.b16 %v45
  %v194 = vunpack.c.l.b16 %v46
  %v195 = vunpack.c.l.b16 %v47
  %v196 = vunpack.c.l.b16 %v48
  %v197 = vunpack.c.l.b16 %v49
  %v198 = vunpack.c.l.b16 %v50
  %v199 = vunpack.c.l.b16 %v51
  %v200 = vunpack.c.l.b16 %v52
  %v201 = vunpack.c.l.b16 %v53
  %v202 = vunpack.c.l.b16 %v54
  %v203 = vunpack.c.l.b16 %v55
  %v204 = vunpack.c.l.b16 %v56
  %v205 = vunpack.c.l.b16 %v57
  %v206 = vunpack.c.l.b16 %v58
  %v207 = vunpack.c.l.b16 %v59
  %v208 = vunpack.c.l.b16 %v60
  %v209 = vunpack.c.l.b16 %v61
  %v210 = vunpack.c.l.b16 %v62
  %v211 = vunpack.c.l.b16 %v63
  %v212 = vunpack.c.l.b16 %v64
  %v213 = vunpack.c.l.b16 %v65
  %v214 = vunpack.c.l.b16 %v66
  %v215 = vunpack.c.l.b16 %v67
  %v216 = vunpack.c.l.b16 %v68
  %v217 = vunpack.c.l.b16 %v69
  %v218 = vunpack.c.l.b16 %v70
  %v219 = vunpack.c.l.b16 %v71
  %v220 = vunpack.c.l.b16 %v72
  %v221 = vunpack.c.l.b16 %v73
  %v222 = vunpack.c.l.b16 %v74
  %v223 = vunpack.c.l.b16 %v75
  %v224 = vunpack.c.l.b16 %v76
  %v225 = vunpack.c.l.b16 %v77
  %v226 = vpack.c.b16 %v163, %v162
  %v227 = vpack.c.b16 %v165, %v164
  %v228 = vpack.c.b16 %v167, %v166
  %v229 = vpack.c.b16 %v169, %v168
  %v230 = vpack.c.b16 %v171, %v170
  %v231 = vpack.c.b16 %v173, %v172
  %v232 = vpack.c.b16 %v175, %v174
  %v233 = vpack.c.b16 %v177, %v176
  %v234 = vpack.c.b16 %v179, %v178
  %v235 = vpack.c.b16 %v181, %v180
  %v236 = vpack.c.b16 %v183, %v182
  %v237 = vpack.c.b16 %v185, %v184
  %v238 = vpack.c.b16 %v187, %v186
  %v239 = vpack.c.b16 %v189, %v188
  %v240 = vpack.c.b16 %v191, %v190
  %v241 = vpack.c.b16 %v193, %v192
  %v242 = vpack.c.b16 %v195, %v194
  %v243 = vpack.c.b16 %v197, %v196
  %v244 = vpack.c.b16 %v199, %v198
  %v245 = vpack.c.b16 %v201, %v200
  %v246 = vpack.c.b16 %v203, %v202
  %v247 = vpack.c.b16 %v205, %v204
  %v248 = vpack.c.b16 %v207, %v206
  %v249 = vpack.c.b16 %v209, %v208
  %v250 = vpack.c.b16 %v211, %v210
  %v251 = vpack.c.b16 %v213, %v212
  %v252 = vpack.c.b16 %v215, %v214
  %v253 = vpack.c.b16 %v217, %v216
  %v254 = vpack.c.b16 %v219, %v218
  %v255 = vpack.c.b16 %v221, %v220
  %v256 = vpack.c.b16 %v223, %v222
  %v257 = vpack.c.b16 %v225, %v224
  %v306 = vunpack.c.l.b16 %v78
  %v307 = vunpack.c.l.b16 %v79
  %v308 = vunpack.c.l.b16 %v80
  %v309 = vunpack.c.l.b16 %v81
  %v310 = vunpack.c.l.b16 %v82
  %v311 = vunpack.c.l.b16 %v83
  %v312 = vunpack.c.l.b16 %v84
  %v313 = vunpack.c.l.b16 %v85
  %v314 = vunpack.c.l.b16 %v86
  %v315 = vunpack.c.l.b16 %v87
  %v316 = vunpack.c.l.b16 %v88
  %v317 = vunpack.c.l.b16 %v89
  %v318 = vunpack.c.l.b16 %v90
  %v319 = vunpack.c.l.b16 %v91
  %v320 = vunpack.c.l.b16 %v92
  %v321 = vunpack.c.l.b16 %v93
  %v322 = vpack.c.b16 %v307, %v306
  %v323 = vpack.c.b16 %v309, %v308
  %v324 = vpack.c.b16 %v311, %v310
  %v325 = vpack.c.b16 %v313, %v312
  %v326 = vpack.c.b16 %v315, %v314
  %v327 = vpack.c.b16 %v317, %v316
  %v328 = vpack.c.b16 %v319, %v318
  %v329 = vpack.c.b16 %v321, %v320
  %338 = vmatpush.bf16.msra.mxu0 %v329
  %339 = vmatpush.bf16.msra.mxu0 %v328
  %340 = vmatpush.bf16.msra.mxu0 %v327
  %341 = vmatpush.bf16.msra.mxu0 %v326
  %342 = vmatpush.bf16.msra.mxu0 %v325
  %343 = vmatpush.bf16.msra.mxu0 %v324
  %344 = vmatpush.bf16.msra.mxu0 %v323
  %345 = vmatpush.bf16.msra.mxu0 %v322
  %346 = vmatmul.bf16.gmra.mxu0 %v226
  %v347 = vpop.f32.mrf.mxu0
  %v348 = vadd.f32 %v96, %v347
  %v349 = vpop.f32.mrf.mxu0
  %v350 = vadd.f32 %v96, %v349
  %351 = vmatmul.bf16.gmra.mxu0 %v227
  %v352 = vpop.f32.mrf.mxu0
  %v353 = vadd.f32 %v96, %v352
  %v354 = vpop.f32.mrf.mxu0
  %v355 = vadd.f32 %v96, %v354
  %356 = vmatmul.bf16.gmra.mxu0 %v228
  %v357 = vpop.f32.mrf.mxu0
  %v358 = vadd.f32 %v96, %v357
  %v359 = vpop.f32.mrf.mxu0
  %v360 = vadd.f32 %v96, %v359
  %361 = vmatmul.bf16.gmra.mxu0 %v229
  %v362 = vpop.f32.mrf.mxu0
  %v363 = vadd.f32 %v96, %v362
  %v364 = vpop.f32.mrf.mxu0
  %v365 = vadd.f32 %v96, %v364
  %366 = vmatmul.bf16.gmra.mxu0 %v230
  %v367 = vpop.f32.mrf.mxu0
  %v368 = vadd.f32 %v96, %v367
  %v369 = vpop.f32.mrf.mxu0
  %v370 = vadd.f32 %v96, %v369
  %371 = vmatmul.bf16.gmra.mxu0 %v231
  %v372 = vpop.f32.mrf.mxu0
  %v373 = vadd.f32 %v96, %v372
  %v374 = vpop.f32.mrf.mxu0
  %v375 = vadd.f32 %v96, %v374
  %376 = vmatmul.bf16.gmra.mxu0 %v232
  %v377 = vpop.f32.mrf.mxu0
  %v378 = vadd.f32 %v96, %v377
  %v379 = vpop.f32.mrf.mxu0
  %v380 = vadd.f32 %v96, %v379
  %381 = vmatmul.bf16.gmra.mxu0 %v233
  %v382 = vpop.f32.mrf.mxu0
  %v383 = vadd.f32 %v96, %v382
  %v384 = vpop.f32.mrf.mxu0
  %v385 = vadd.f32 %v96, %v384
  %386 = vmatmul.bf16.gmra.mxu0 %v234
  %v387 = vpop.f32.mrf.mxu0
  %v388 = vadd.f32 %v96, %v387
  %v389 = vpop.f32.mrf.mxu0
  %v390 = vadd.f32 %v96, %v389
  %391 = vmatmul.bf16.gmra.mxu0 %v235
  %v392 = vpop.f32.mrf.mxu0
  %v393 = vadd.f32 %v96, %v392
  %v394 = vpop.f32.mrf.mxu0
  %v395 = vadd.f32 %v96, %v394
  %396 = vmatmul.bf16.gmra.mxu0 %v236
  %v397 = vpop.f32.mrf.mxu0
  %v398 = vadd.f32 %v96, %v397
  %v399 = vpop.f32.mrf.mxu0
  %v400 = vadd.f32 %v96, %v399
  %401 = vmatmul.bf16.gmra.mxu0 %v237
  %v402 = vpop.f32.mrf.mxu0
  %v403 = vadd.f32 %v96, %v402
  %v404 = vpop.f32.mrf.mxu0
  %v405 = vadd.f32 %v96, %v404
  %406 = vmatmul.bf16.gmra.mxu0 %v238
  %v407 = vpop.f32.mrf.mxu0
  %v408 = vadd.f32 %v96, %v407
  %v409 = vpop.f32.mrf.mxu0
  %v410 = vadd.f32 %v96, %v409
  %411 = vmatmul.bf16.gmra.mxu0 %v239
  %v412 = vpop.f32.mrf.mxu0
  %v413 = vadd.f32 %v96, %v412
  %v414 = vpop.f32.mrf.mxu0
  %v415 = vadd.f32 %v96, %v414
  %416 = vmatmul.bf16.gmra.mxu0 %v240
  %v417 = vpop.f32.mrf.mxu0
  %v418 = vadd.f32 %v96, %v417
  %v419 = vpop.f32.mrf.mxu0
  %v420 = vadd.f32 %v96, %v419
  %421 = vmatmul.bf16.gmra.mxu0 %v241
  %v422 = vpop.f32.mrf.mxu0
  %v423 = vadd.f32 %v96, %v422
  %v424 = vpop.f32.mrf.mxu0
  %v425 = vadd.f32 %v96, %v424
  %426 = vmatmul.bf16.gmra.mxu0 %v242
  %v427 = vpop.f32.mrf.mxu0
  %v428 = vadd.f32 %v96, %v427
  %v429 = vpop.f32.mrf.mxu0
  %v430 = vadd.f32 %v96, %v429
  %431 = vmatmul.bf16.gmra.mxu0 %v243
  %v432 = vpop.f32.mrf.mxu0
  %v433 = vadd.f32 %v96, %v432
  %v434 = vpop.f32.mrf.mxu0
  %v435 = vadd.f32 %v96, %v434
  %436 = vmatmul.bf16.gmra.mxu0 %v244
  %v437 = vpop.f32.mrf.mxu0
  %v438 = vadd.f32 %v96, %v437
  %v439 = vpop.f32.mrf.mxu0
  %v440 = vadd.f32 %v96, %v439
  %441 = vmatmul.bf16.gmra.mxu0 %v245
  %v442 = vpop.f32.mrf.mxu0
  %v443 = vadd.f32 %v96, %v442
  %v444 = vpop.f32.mrf.mxu0
  %v445 = vadd.f32 %v96, %v444
  %446 = vmatmul.bf16.gmra.mxu0 %v246
  %v447 = vpop.f32.mrf.mxu0
  %v448 = vadd.f32 %v96, %v447
  %v449 = vpop.f32.mrf.mxu0
  %v450 = vadd.f32 %v96, %v449
  %451 = vmatmul.bf16.gmra.mxu0 %v247
  %v452 = vpop.f32.mrf.mxu0
  %v453 = vadd.f32 %v96, %v452
  %v454 = vpop.f32.mrf.mxu0
  %v455 = vadd.f32 %v96, %v454
  %456 = vmatmul.bf16.gmra.mxu0 %v248
  %v457 = vpop.f32.mrf.mxu0
  %v458 = vadd.f32 %v96, %v457
  %v459 = vpop.f32.mrf.mxu0
  %v460 = vadd.f32 %v96, %v459
  %461 = vmatmul.bf16.gmra.mxu0 %v249
  %v462 = vpop.f32.mrf.mxu0
  %v463 = vadd.f32 %v96, %v462
  %v464 = vpop.f32.mrf.mxu0
  %v465 = vadd.f32 %v96, %v464
  %466 = vmatmul.bf16.gmra.mxu0 %v250
  %v467 = vpop.f32.mrf.mxu0
  %v468 = vadd.f32 %v96, %v467
  %v469 = vpop.f32.mrf.mxu0
  %v470 = vadd.f32 %v96, %v469
  %471 = vmatmul.bf16.gmra.mxu0 %v251
  %v472 = vpop.f32.mrf.mxu0
  %v473 = vadd.f32 %v96, %v472
  %v474 = vpop.f32.mrf.mxu0
  %v475 = vadd.f32 %v96, %v474
  %476 = vmatmul.bf16.gmra.mxu0 %v252
  %v477 = vpop.f32.mrf.mxu0
  %v478 = vadd.f32 %v96, %v477
  %v479 = vpop.f32.mrf.mxu0
  %v480 = vadd.f32 %v96, %v479
  %481 = vmatmul.bf16.gmra.mxu0 %v253
  %v482 = vpop.f32.mrf.mxu0
  %v483 = vadd.f32 %v96, %v482
  %v484 = vpop.f32.mrf.mxu0
  %v485 = vadd.f32 %v96, %v484
  %486 = vmatmul.bf16.gmra.mxu0 %v254
  %v487 = vpop.f32.mrf.mxu0
  %v488 = vadd.f32 %v96, %v487
  %v489 = vpop.f32.mrf.mxu0
  %v490 = vadd.f32 %v96, %v489
  %491 = vmatmul.bf16.gmra.mxu0 %v255
  %v492 = vpop.f32.mrf.mxu0
  %v493 = vadd.f32 %v96, %v492
  %v494 = vpop.f32.mrf.mxu0
  %v495 = vadd.f32 %v96, %v494
  %496 = vmatmul.bf16.gmra.mxu0 %v256
  %v497 = vpop.f32.mrf.mxu0
  %v498 = vadd.f32 %v96, %v497
  %v499 = vpop.f32.mrf.mxu0
  %v500 = vadd.f32 %v96, %v499
  %501 = vmatmul.bf16.gmra.mxu0 %v257
  %v502 = vpop.f32.mrf.mxu0
  %v503 = vadd.f32 %v96, %v502
  %v504 = vpop.f32.mrf.mxu0
  %v505 = vadd.f32 %v96, %v504
  %506 = vdwg.mxu0
  %v507 = vmax.f32 %v348, 0.0
  %v508 = vmax.f32 %v350, 0.0
  %v509 = vmax.f32 %v353, 0.0
  %v510 = vmax.f32 %v355, 0.0
  %v511 = vmax.f32 %v358, 0.0
  %v512 = vmax.f32 %v360, 0.0
  %v513 = vmax.f32 %v363, 0.0
  %v514 = vmax.f32 %v365, 0.0
  %v515 = vmax.f32 %v368, 0.0
  %v516 = vmax.f32 %v370, 0.0
  %v517 = vmax.f32 %v373, 0.0
  %v518 = vmax.f32 %v375, 0.0
  %v519 = vmax.f32 %v378, 0.0
  %v520 = vmax.f32 %v380, 0.0
  %v521 = vmax.f32 %v383, 0.0
  %v522 = vmax.f32 %v385, 0.0
  %v523 = vmax.f32 %v388, 0.0
  %v524 = vmax.f32 %v390, 0.0
  %v525 = vmax.f32 %v393, 0.0
  %v526 = vmax.f32 %v395, 0.0
  %v527 = vmax.f32 %v398, 0.0
  %v528 = vmax.f32 %v400, 0.0
  %v529 = vmax.f32 %v403, 0.0
  %v530 = vmax.f32 %v405, 0.0
  %v531 = vmax.f32 %v408, 0.0
  %v532 = vmax.f32 %v410, 0.0
  %v533 = vmax.f32 %v413, 0.0
  %v534 = vmax.f32 %v415, 0.0
  %v535 = vmax.f32 %v418, 0.0
  %v536 = vmax.f32 %v420, 0.0
  %v537 = vmax.f32 %v423, 0.0
  %v538 = vmax.f32 %v425, 0.0
  %v539 = vmax.f32 %v428, 0.0
  %v540 = vmax.f32 %v430, 0.0
  %v541 = vmax.f32 %v433, 0.0
  %v542 = vmax.f32 %v435, 0.0
  %v543 = vmax.f32 %v438, 0.0
  %v544 = vmax.f32 %v440, 0.0
  %v545 = vmax.f32 %v443, 0.0
  %v546 = vmax.f32 %v445, 0.0
  %v547 = vmax.f32 %v448, 0.0
  %v548 = vmax.f32 %v450, 0.0
  %v549 = vmax.f32 %v453, 0.0
  %v550 = vmax.f32 %v455, 0.0
  %v551 = vmax.f32 %v458, 0.0
  %v552 = vmax.f32 %v460, 0.0
  %v553 = vmax.f32 %v463, 0.0
  %v554 = vmax.f32 %v465, 0.0
  %v555 = vmax.f32 %v468, 0.0
  %v556 = vmax.f32 %v470, 0.0
  %v557 = vmax.f32 %v473, 0.0
  %v558 = vmax.f32 %v475, 0.0
  %v559 = vmax.f32 %v478, 0.0
  %v560 = vmax.f32 %v480, 0.0
  %v561 = vmax.f32 %v483, 0.0
  %v562 = vmax.f32 %v485, 0.0
  %v563 = vmax.f32 %v488, 0.0
  %v564 = vmax.f32 %v490, 0.0
  %v565 = vmax.f32 %v493, 0.0
  %v566 = vmax.f32 %v495, 0.0
  %v567 = vmax.f32 %v498, 0.0
  %v568 = vmax.f32 %v500, 0.0
  %v569 = vmax.f32 %v503, 0.0
  %v570 = vmax.f32 %v505, 0.0
  %v571 = vpack.c.bf16 %v507, %v507
  %v572 = vpack.c.bf16 %v508, %v508
  %v573 = vpack.c.bf16 %v509, %v509
  %v574 = vpack.c.bf16 %v510, %v510
  %v575 = vpack.c.bf16 %v511, %v511
  %v576 = vpack.c.bf16 %v512, %v512
  %v577 = vpack.c.bf16 %v513, %v513
  %v578 = vpack.c.bf16 %v514, %v514
  %v579 = vpack.c.bf16 %v515, %v515
  %v580 = vpack.c.bf16 %v516, %v516
  %v581 = vpack.c.bf16 %v517, %v517
  %v582 = vpack.c.bf16 %v518, %v518
  %v583 = vpack.c.bf16 %v519, %v519
  %v584 = vpack.c.bf16 %v520, %v520
  %v585 = vpack.c.bf16 %v521, %v521
  %v586 = vpack.c.bf16 %v522, %v522
  %v587 = vpack.c.bf16 %v523, %v523
  %v588 = vpack.c.bf16 %v524, %v524
  %v589 = vpack.c.bf16 %v525, %v525
  %v590 = vpack.c.bf16 %v526, %v526
  %v591 = vpack.c.bf16 %v527, %v527
  %v592 = vpack.c.bf16 %v528, %v528
  %v593 = vpack.c.bf16 %v529, %v529
  %v594 = vpack.c.bf16 %v530, %v530
  %v595 = vpack.c.bf16 %v531, %v531
  %v596 = vpack.c.bf16 %v532, %v532
  %v597 = vpack.c.bf16 %v533, %v533
  %v598 = vpack.c.bf16 %v534, %v534
  %v599 = vpack.c.bf16 %v535, %v535
  %v600 = vpack.c.bf16 %v536, %v536
  %v601 = vpack.c.bf16 %v537, %v537
  %v602 = vpack.c.bf16 %v538, %v538
  %v603 = vpack.c.bf16 %v539, %v539
  %v604 = vpack.c.bf16 %v540, %v540
  %v605 = vpack.c.bf16 %v541, %v541
  %v606 = vpack.c.bf16 %v542, %v542
  %v607 = vpack.c.bf16 %v543, %v543
  %v608 = vpack.c.bf16 %v544, %v544
  %v609 = vpack.c.bf16 %v545, %v545
  %v610 = vpack.c.bf16 %v546, %v546
  %v611 = vpack.c.bf16 %v547, %v547
  %v612 = vpack.c.bf16 %v548, %v548
  %v613 = vpack.c.bf16 %v549, %v549
  %v614 = vpack.c.bf16 %v550, %v550
  %v615 = vpack.c.bf16 %v551, %v551
  %v616 = vpack.c.bf16 %v552, %v552
  %v617 = vpack.c.bf16 %v553, %v553
  %v618 = vpack.c.bf16 %v554, %v554
  %v619 = vpack.c.bf16 %v555, %v555
  %v620 = vpack.c.bf16 %v556, %v556
  %v621 = vpack.c.bf16 %v557, %v557
  %v622 = vpack.c.bf16 %v558, %v558
  %v623 = vpack.c.bf16 %v559, %v559
  %v624 = vpack.c.bf16 %v560, %v560
  %v625 = vpack.c.bf16 %v561, %v561
  %v626 = vpack.c.bf16 %v562, %v562
  %v627 = vpack.c.bf16 %v563, %v563
  %v628 = vpack.c.bf16 %v564, %v564
  %v629 = vpack.c.bf16 %v565, %v565
  %v630 = vpack.c.bf16 %v566, %v566
  %v631 = vpack.c.bf16 %v567, %v567
  %v632 = vpack.c.bf16 %v568, %v568
  %v633 = vpack.c.bf16 %v569, %v569
  %v634 = vpack.c.bf16 %v570, %v570
  %635 = vst [vmem:[%s3] sm:$0xf] %v571
  %636 = vst [vmem:[%s3 + $0x4] sm:$0xf] %v572
  %637 = vst [vmem:[%s3 + $0x8] sm:$0xf] %v573
  %638 = vst [vmem:[%s3 + $0xc] sm:$0xf] %v574
  %639 = vst [vmem:[%s3 + $0x10] sm:$0xf] %v575
  %640 = vst [vmem:[%s3 + $0x14] sm:$0xf] %v576
  %641 = vst [vmem:[%s3 + $0x18] sm:$0xf] %v577
  %642 = vst [vmem:[%s3 + $0x1c] sm:$0xf] %v578
  %643 = vst [vmem:[%s3 + $0x20] sm:$0xf] %v579
  %644 = vst [vmem:[%s3 + $0x24] sm:$0xf] %v580
  %645 = vst [vmem:[%s3 + $0x28] sm:$0xf] %v581
  %646 = vst [vmem:[%s3 + $0x2c] sm:$0xf] %v582
  %647 = vst [vmem:[%s3 + $0x30] sm:$0xf] %v583
  %648 = vst [vmem:[%s3 + $0x34] sm:$0xf] %v584
  %649 = vst [vmem:[%s3 + $0x38] sm:$0xf] %v585
  %650 = vst [vmem:[%s3 + $0x3c] sm:$0xf] %v586
  %651 = vst [vmem:[%s3 + $0x40] sm:$0xf] %v587
  %652 = vst [vmem:[%s3 + $0x44] sm:$0xf] %v588
  %653 = vst [vmem:[%s3 + $0x48] sm:$0xf] %v589
  %654 = vst [vmem:[%s3 + $0x4c] sm:$0xf] %v590
  %655 = vst [vmem:[%s3 + $0x50] sm:$0xf] %v591
  %656 = vst [vmem:[%s3 + $0x54] sm:$0xf] %v592
  %657 = vst [vmem:[%s3 + $0x58] sm:$0xf] %v593
  %658 = vst [vmem:[%s3 + $0x5c] sm:$0xf] %v594
  %659 = vst [vmem:[%s3 + $0x60] sm:$0xf] %v595
  %660 = vst [vmem:[%s3 + $0x64] sm:$0xf] %v596
  %661 = vst [vmem:[%s3 + $0x68] sm:$0xf] %v597
  %662 = vst [vmem:[%s3 + $0x6c] sm:$0xf] %v598
  %663 = vst [vmem:[%s3 + $0x70] sm:$0xf] %v599
  %664 = vst [vmem:[%s3 + $0x74] sm:$0xf] %v600
  %665 = vst [vmem:[%s3 + $0x78] sm:$0xf] %v601
  %666 = vst [vmem:[%s3 + $0x7c] sm:$0xf] %v602
  %667 = vst [vmem:[%s3 + $0x80] sm:$0xf] %v603
  %668 = vst [vmem:[%s3 + $0x84] sm:$0xf] %v604
  %669 = vst [vmem:[%s3 + $0x88] sm:$0xf] %v605
  %670 = vst [vmem:[%s3 + $0x8c] sm:$0xf] %v606
  %671 = vst [vmem:[%s3 + $0x90] sm:$0xf] %v607
  %672 = vst [vmem:[%s3 + $0x94] sm:$0xf] %v608
  %673 = vst [vmem:[%s3 + $0x98] sm:$0xf] %v609
  %674 = vst [vmem:[%s3 + $0x9c] sm:$0xf] %v610
  %675 = vst [vmem:[%s3 + $0xa0] sm:$0xf] %v611
  %676 = vst [vmem:[%s3 + $0xa4] sm:$0xf] %v612
  %677 = vst [vmem:[%s3 + $0xa8] sm:$0xf] %v613
  %678 = vst [vmem:[%s3 + $0xac] sm:$0xf] %v614
  %679 = vst [vmem:[%s3 + $0xb0] sm:$0xf] %v615
  %680 = vst [vmem:[%s3 + $0xb4] sm:$0xf] %v616
  %681 = vst [vmem:[%s3 + $0xb8] sm:$0xf] %v617
  %682 = vst [vmem:[%s3 + $0xbc] sm:$0xf] %v618
  %683 = vst [vmem:[%s3 + $0xc0] sm:$0xf] %v619
  %684 = vst [vmem:[%s3 + $0xc4] sm:$0xf] %v620
  %685 = vst [vmem:[%s3 + $0xc8] sm:$0xf] %v621
  %686 = vst [vmem:[%s3 + $0xcc] sm:$0xf] %v622
  %687 = vst [vmem:[%s3 + $0xd0] sm:$0xf] %v623
  %688 = vst [vmem:[%s3 + $0xd4] sm:$0xf] %v624
  %689 = vst [vmem:[%s3 + $0xd8] sm:$0xf] %v625
  %690 = vst [vmem:[%s3 + $0xdc] sm:$0xf] %v626
  %691 = vst [vmem:[%s3 + $0xe0] sm:$0xf] %v627
  %692 = vst [vmem:[%s3 + $0xe4] sm:$0xf] %v628
  %693 = vst [vmem:[%s3 + $0xe8] sm:$0xf] %v629
  %694 = vst [vmem:[%s3 + $0xec] sm:$0xf] %v630
  %695 = vst [vmem:[%s3 + $0xf0] sm:$0xf] %v631
  %696 = vst [vmem:[%s3 + $0xf4] sm:$0xf] %v632
  %697 = vst [vmem:[%s3 + $0xf8] sm:$0xf] %v633
  %698 = vst [vmem:[%s3 + $0xfc] sm:$0xf] %v634
  // Predicated region
  $region14: #{bottleneck_forward.3} parent=0 // pred_check
    _
  $region15: #{bottleneck_forward.3} parent=0 // pred_check_branch
    %700 = sbr.rel (0) target = $region17
  $region16: #{bottleneck_forward.3} parent=0 // pred_region
    _
  $region17: #{bottleneck_forward.3} parent=0 // pred_fallthru
    _
  // Predicated region
  $region18: #{bottleneck_forward.3} parent=0 // pred_check
    _
  $region19: #{bottleneck_forward.3} parent=0 // pred_check_branch
    %702 = sbr.rel (0) target = $region21
  $region20: #{bottleneck_forward.3} parent=0 // pred_region
    _
  $region21: #{bottleneck_forward.3} parent=0 // pred_fallthru
    _

// kernel: bottleneck_forward.5
$region0: #{bottleneck_forward.5}
  #allocation0 [shape = 'u32[]', space=smem, size = 0x4, offset = 0x4, fixed_abs, tag = 'smem constant byte address 0x4 - core index']
  #allocation1 [shape = 'u32[72,128]{1,0:T(1,128)}', space=vmem, size = 0x9000, scoped, tag = 'internal scratch']
  %s0 = inlined_call_operand.vmem [shape: bf16[128,128], index: 0, kind: input, shape index: {}]
  %s1 = inlined_call_operand.vmem [shape: bf16[128,128], index: 1, kind: input, shape index: {}]
  %s2 = inlined_call_operand.vmem [shape: bf16[128,128], index: 2, kind: input, shape index: {}]
  %s3 = inlined_call_operand.vmem [shape: bf16[128,128], index: 3, kind: input, shape index: {}]
  %s4 = inlined_call_operand.vmem [shape: f32[1,128], index: 4, kind: input, shape index: {}]
  %s5 = inlined_call_operand.vmem [shape: bf16[128,128], index: 5, kind: output, shape index: {}]
  %s6 = sld [smem:[#allocation0]]
  $region30: #{bottleneck_forward.5} parent=0
    _
  %s8 = ssub.s32 1, %s6
  %s9 = scalar_select 0, %s8, %s6
  // Predicated region
  $region2: #{bottleneck_forward.5} parent=0 // pred_check
    _
  $region3: #{bottleneck_forward.5} parent=0 // pred_check_branch
    %11 = sbr.rel (0) target = $region5
  $region4: #{bottleneck_forward.5} parent=0 // pred_region
    _
  $region5: #{bottleneck_forward.5} parent=0 // pred_fallthru
    _
  // Predicated region
  $region6: #{bottleneck_forward.5} parent=0 // pred_check
    _
  $region7: #{bottleneck_forward.5} parent=0 // pred_check_branch
    %13 = sbr.rel (0) target = $region9
  $region8: #{bottleneck_forward.5} parent=0 // pred_region
    _
  $region9: #{bottleneck_forward.5} parent=0 // pred_fallthru
    _
  // Predicated region
  $region10: #{bottleneck_forward.5} parent=0 // pred_check
    _
  $region11: #{bottleneck_forward.5} parent=0 // pred_check_branch
    %15 = sbr.rel (0) target = $region13
  $region12: #{bottleneck_forward.5} parent=0 // pred_region
    _
  $region13: #{bottleneck_forward.5} parent=0 // pred_fallthru
    _
  // Predicated region
  $region14: #{bottleneck_forward.5} parent=0 // pred_check
    _
  $region15: #{bottleneck_forward.5} parent=0 // pred_check_branch
    %17 = sbr.rel (0) target = $region17
  $region16: #{bottleneck_forward.5} parent=0 // pred_region
    _
  $region17: #{bottleneck_forward.5} parent=0 // pred_fallthru
    _
  // Predicated region
  $region18: #{bottleneck_forward.5} parent=0 // pred_check
    _
  $region19: #{bottleneck_forward.5} parent=0 // pred_check_branch
    %19 = sbr.rel (0) target = $region21
  $region20: #{bottleneck_forward.5} parent=0 // pred_region
    _
  $region21: #{bottleneck_forward.5} parent=0 // pred_fallthru
    _
  %v20 = vld [vmem:[%s0] sm:$0xf]
  %v21 = vld [vmem:[%s0 + $0x4] sm:$0xf]
  %v22 = vld [vmem:[%s0 + $0x8] sm:$0xf]
  %v23 = vld [vmem:[%s0 + $0xc] sm:$0xf]
  %v24 = vld [vmem:[%s0 + $0x10] sm:$0xf]
  %v25 = vld [vmem:[%s0 + $0x14] sm:$0xf]
  %v26 = vld [vmem:[%s0 + $0x18] sm:$0xf]
  %v27 = vld [vmem:[%s0 + $0x1c] sm:$0xf]
  %v28 = vld [vmem:[%s0 + $0x20] sm:$0xf]
  %v29 = vld [vmem:[%s0 + $0x24] sm:$0xf]
  %v30 = vld [vmem:[%s0 + $0x28] sm:$0xf]
  %v31 = vld [vmem:[%s0 + $0x2c] sm:$0xf]
  %v32 = vld [vmem:[%s0 + $0x30] sm:$0xf]
  %v33 = vld [vmem:[%s0 + $0x34] sm:$0xf]
  %v34 = vld [vmem:[%s0 + $0x38] sm:$0xf]
  %v35 = vld [vmem:[%s0 + $0x3c] sm:$0xf]
  %v36 = vld [vmem:[%s1] sm:$0xf]
  %v37 = vld [vmem:[%s1 + $0x4] sm:$0xf]
  %v38 = vld [vmem:[%s1 + $0x8] sm:$0xf]
  %v39 = vld [vmem:[%s1 + $0xc] sm:$0xf]
  %v40 = vld [vmem:[%s1 + $0x10] sm:$0xf]
  %v41 = vld [vmem:[%s1 + $0x14] sm:$0xf]
  %v42 = vld [vmem:[%s1 + $0x18] sm:$0xf]
  %v43 = vld [vmem:[%s1 + $0x1c] sm:$0xf]
  %v44 = vld [vmem:[%s1 + $0x20] sm:$0xf]
  %v45 = vld [vmem:[%s1 + $0x24] sm:$0xf]
  %v46 = vld [vmem:[%s1 + $0x28] sm:$0xf]
  %v47 = vld [vmem:[%s1 + $0x2c] sm:$0xf]
  %v48 = vld [vmem:[%s1 + $0x30] sm:$0xf]
  %v49 = vld [vmem:[%s1 + $0x34] sm:$0xf]
  %v50 = vld [vmem:[%s1 + $0x38] sm:$0xf]
  %v51 = vld [vmem:[%s1 + $0x3c] sm:$0xf]
  %v52 = vld [vmem:[%s2] sm:$0xf]
  %v53 = vld [vmem:[%s2 + $0x4] sm:$0xf]
  %v54 = vld [vmem:[%s2 + $0x8] sm:$0xf]
  %v55 = vld [vmem:[%s2 + $0xc] sm:$0xf]
  %v56 = vld [vmem:[%s2 + $0x10] sm:$0xf]
  %v57 = vld [vmem:[%s2 + $0x14] sm:$0xf]
  %v58 = vld [vmem:[%s2 + $0x18] sm:$0xf]
  %v59 = vld [vmem:[%s2 + $0x1c] sm:$0xf]
  %v60 = vld [vmem:[%s2 + $0x20] sm:$0xf]
  %v61 = vld [vmem:[%s2 + $0x24] sm:$0xf]
  %v62 = vld [vmem:[%s2 + $0x28] sm:$0xf]
  %v63 = vld [vmem:[%s2 + $0x2c] sm:$0xf]
  %v64 = vld [vmem:[%s2 + $0x30] sm:$0xf]
  %v65 = vld [vmem:[%s2 + $0x34] sm:$0xf]
  %v66 = vld [vmem:[%s2 + $0x38] sm:$0xf]
  %v67 = vld [vmem:[%s2 + $0x3c] sm:$0xf]
  %v68 = vld [vmem:[%s3] sm:$0xf]
  %v69 = vld [vmem:[%s3 + $0x4] sm:$0xf]
  %v70 = vld [vmem:[%s3 + $0x8] sm:$0xf]
  %v71 = vld [vmem:[%s3 + $0xc] sm:$0xf]
  %v72 = vld [vmem:[%s3 + $0x10] sm:$0xf]
  %v73 = vld [vmem:[%s3 + $0x14] sm:$0xf]
  %v74 = vld [vmem:[%s3 + $0x18] sm:$0xf]
  %v75 = vld [vmem:[%s3 + $0x1c] sm:$0xf]
  %v76 = vld [vmem:[%s3 + $0x20] sm:$0xf]
  %v77 = vld [vmem:[%s3 + $0x24] sm:$0xf]
  %v78 = vld [vmem:[%s3 + $0x28] sm:$0xf]
  %v79 = vld [vmem:[%s3 + $0x2c] sm:$0xf]
  %v80 = vld [vmem:[%s3 + $0x30] sm:$0xf]
  %v81 = vld [vmem:[%s3 + $0x34] sm:$0xf]
  %v82 = vld [vmem:[%s3 + $0x38] sm:$0xf]
  %v83 = vld [vmem:[%s3 + $0x3c] sm:$0xf]
  %v100 = vunpack.c.l.b16 %v52
  %v101 = vunpack.c.l.b16 %v53
  %v102 = vunpack.c.l.b16 %v54
  %v103 = vunpack.c.l.b16 %v55
  %v104 = vunpack.c.l.b16 %v56
  %v105 = vunpack.c.l.b16 %v57
  %v106 = vunpack.c.l.b16 %v58
  %v107 = vunpack.c.l.b16 %v59
  %v108 = vunpack.c.l.b16 %v60
  %v109 = vunpack.c.l.b16 %v61
  %v110 = vunpack.c.l.b16 %v62
  %v111 = vunpack.c.l.b16 %v63
  %v112 = vunpack.c.l.b16 %v64
  %v113 = vunpack.c.l.b16 %v65
  %v114 = vunpack.c.l.b16 %v66
  %v115 = vunpack.c.l.b16 %v67
  %v116 = vpack.c.b16 %v101, %v100
  %v117 = vpack.c.b16 %v103, %v102
  %v118 = vpack.c.b16 %v105, %v104
  %v119 = vpack.c.b16 %v107, %v106
  %v120 = vpack.c.b16 %v109, %v108
  %v121 = vpack.c.b16 %v111, %v110
  %v122 = vpack.c.b16 %v113, %v112
  %v123 = vpack.c.b16 %v115, %v114
  %v148 = vunpack.c.l.b16 %v68
  %v149 = vunpack.c.l.b16 %v69
  %v150 = vunpack.c.l.b16 %v70
  %v151 = vunpack.c.l.b16 %v71
  %v152 = vunpack.c.l.b16 %v72
  %v153 = vunpack.c.l.b16 %v73
  %v154 = vunpack.c.l.b16 %v74
  %v155 = vunpack.c.l.b16 %v75
  %v156 = vunpack.c.l.b16 %v76
  %v157 = vunpack.c.l.b16 %v77
  %v158 = vunpack.c.l.b16 %v78
  %v159 = vunpack.c.l.b16 %v79
  %v160 = vunpack.c.l.b16 %v80
  %v161 = vunpack.c.l.b16 %v81
  %v162 = vunpack.c.l.b16 %v82
  %v163 = vunpack.c.l.b16 %v83
  %v164 = vpack.c.b16 %v149, %v148
  %v165 = vpack.c.b16 %v151, %v150
  %v166 = vpack.c.b16 %v153, %v152
  %v167 = vpack.c.b16 %v155, %v154
  %v168 = vpack.c.b16 %v157, %v156
  %v169 = vpack.c.b16 %v159, %v158
  %v170 = vpack.c.b16 %v161, %v160
  %v171 = vpack.c.b16 %v163, %v162
  %180 = vmatpush.bf16.msra.mxu0 %v171
  %181 = vmatpush.bf16.msra.mxu0 %v170
  %182 = vmatpush.bf16.msra.mxu0 %v169
  %183 = vmatpush.bf16.msra.mxu0 %v168
  %184 = vmatpush.bf16.msra.mxu0 %v167
  %185 = vmatpush.bf16.msra.mxu0 %v166
  %186 = vmatpush.bf16.msra.mxu0 %v165
  %187 = vmatpush.bf16.msra.mxu0 %v164
  %188 = vmatmul.bf16.gmra.mxu0 %v116
  %v189 = vpop.f32.mrf.mxu0
  %v190 = vadd.f32 0.0, %v189
  %v191 = vpop.f32.mrf.mxu0
  %v192 = vadd.f32 0.0, %v191
  %193 = vmatmul.bf16.gmra.mxu0 %v117
  %v194 = vpop.f32.mrf.mxu0
  %v195 = vadd.f32 0.0, %v194
  %v196 = vpop.f32.mrf.mxu0
  %v197 = vadd.f32 0.0, %v196
  %198 = vmatmul.bf16.gmra.mxu0 %v118
  %v199 = vpop.f32.mrf.mxu0
  %v200 = vadd.f32 0.0, %v199
  %v201 = vpop.f32.mrf.mxu0
  %v202 = vadd.f32 0.0, %v201
  %203 = vmatmul.bf16.gmra.mxu0 %v119
  %v204 = vpop.f32.mrf.mxu0
  %v205 = vadd.f32 0.0, %v204
  %v206 = vpop.f32.mrf.mxu0
  %v207 = vadd.f32 0.0, %v206
  %208 = vmatmul.bf16.gmra.mxu0 %v120
  %v209 = vpop.f32.mrf.mxu0
  %v210 = vadd.f32 0.0, %v209
  %v211 = vpop.f32.mrf.mxu0
  %v212 = vadd.f32 0.0, %v211
  %213 = vmatmul.bf16.gmra.mxu0 %v121
  %v214 = vpop.f32.mrf.mxu0
  %v215 = vadd.f32 0.0, %v214
  %v216 = vpop.f32.mrf.mxu0
  %v217 = vadd.f32 0.0, %v216
  %218 = vmatmul.bf16.gmra.mxu0 %v122
  %v219 = vpop.f32.mrf.mxu0
  %v220 = vadd.f32 0.0, %v219
  %v221 = vpop.f32.mrf.mxu0
  %v222 = vadd.f32 0.0, %v221
  %223 = vmatmul.bf16.gmra.mxu0 %v123
  %v224 = vpop.f32.mrf.mxu0
  %v225 = vadd.f32 0.0, %v224
  %v226 = vpop.f32.mrf.mxu0
  %v227 = vadd.f32 0.0, %v226
  %228 = vdwg.mxu0
  %v245 = vunpack.c.l.b16 %v20
  %v246 = vunpack.c.l.b16 %v21
  %v247 = vunpack.c.l.b16 %v22
  %v248 = vunpack.c.l.b16 %v23
  %v249 = vunpack.c.l.b16 %v24
  %v250 = vunpack.c.l.b16 %v25
  %v251 = vunpack.c.l.b16 %v26
  %v252 = vunpack.c.l.b16 %v27
  %v253 = vunpack.c.l.b16 %v28
  %v254 = vunpack.c.l.b16 %v29
  %v255 = vunpack.c.l.b16 %v30
  %v256 = vunpack.c.l.b16 %v31
  %v257 = vunpack.c.l.b16 %v32
  %v258 = vunpack.c.l.b16 %v33
  %v259 = vunpack.c.l.b16 %v34
  %v260 = vunpack.c.l.b16 %v35
  %v261 = vpack.c.b16 %v246, %v245
  %v262 = vpack.c.b16 %v248, %v247
  %v263 = vpack.c.b16 %v250, %v249
  %v264 = vpack.c.b16 %v252, %v251
  %v265 = vpack.c.b16 %v254, %v253
  %v266 = vpack.c.b16 %v256, %v255
  %v267 = vpack.c.b16 %v258, %v257
  %v268 = vpack.c.b16 %v260, %v259
  %v293 = vunpack.c.l.b16 %v36
  %v294 = vunpack.c.l.b16 %v37
  %v295 = vunpack.c.l.b16 %v38
  %v296 = vunpack.c.l.b16 %v39
  %v297 = vunpack.c.l.b16 %v40
  %v298 = vunpack.c.l.b16 %v41
  %v299 = vunpack.c.l.b16 %v42
  %v300 = vunpack.c.l.b16 %v43
  %v301 = vunpack.c.l.b16 %v44
  %v302 = vunpack.c.l.b16 %v45
  %v303 = vunpack.c.l.b16 %v46
  %v304 = vunpack.c.l.b16 %v47
  %v305 = vunpack.c.l.b16 %v48
  %v306 = vunpack.c.l.b16 %v49
  %v307 = vunpack.c.l.b16 %v50
  %v308 = vunpack.c.l.b16 %v51
  %v309 = vpack.c.b16 %v294, %v293
  %v310 = vpack.c.b16 %v296, %v295
  %v311 = vpack.c.b16 %v298, %v297
  %v312 = vpack.c.b16 %v300, %v299
  %v313 = vpack.c.b16 %v302, %v301
  %v314 = vpack.c.b16 %v304, %v303
  %v315 = vpack.c.b16 %v306, %v305
  %v316 = vpack.c.b16 %v308, %v307
  %325 = vmatpush.bf16.msra.mxu0 %v316
  %326 = vmatpush.bf16.msra.mxu0 %v315
  %327 = vmatpush.bf16.msra.mxu0 %v314
  %328 = vmatpush.bf16.msra.mxu0 %v313
  %329 = vmatpush.bf16.msra.mxu0 %v312
  %330 = vmatpush.bf16.msra.mxu0 %v311
  %331 = vmatpush.bf16.msra.mxu0 %v310
  %332 = vmatpush.bf16.msra.mxu0 %v309
  %333 = vmatmul.bf16.gmra.mxu0 %v261
  %v334 = vpop.f32.mrf.mxu0
  %v335 = vadd.f32 %v190, %v334
  %v336 = vpop.f32.mrf.mxu0
  %v337 = vadd.f32 %v192, %v336
  %338 = vmatmul.bf16.gmra.mxu0 %v262
  %v339 = vpop.f32.mrf.mxu0
  %v340 = vadd.f32 %v195, %v339
  %v341 = vpop.f32.mrf.mxu0
  %v342 = vadd.f32 %v197, %v341
  %343 = vmatmul.bf16.gmra.mxu0 %v263
  %v344 = vpop.f32.mrf.mxu0
  %v345 = vadd.f32 %v200, %v344
  %v346 = vpop.f32.mrf.mxu0
  %v347 = vadd.f32 %v202, %v346
  %348 = vmatmul.bf16.gmra.mxu0 %v264
  %v349 = vpop.f32.mrf.mxu0
  %v350 = vadd.f32 %v205, %v349
  %v351 = vpop.f32.mrf.mxu0
  %v352 = vadd.f32 %v207, %v351
  %353 = vmatmul.bf16.gmra.mxu0 %v265
  %v354 = vpop.f32.mrf.mxu0
  %v355 = vadd.f32 %v210, %v354
  %v356 = vpop.f32.mrf.mxu0
  %v357 = vadd.f32 %v212, %v356
  %358 = vmatmul.bf16.gmra.mxu0 %v266
  %v359 = vpop.f32.mrf.mxu0
  %v360 = vadd.f32 %v215, %v359
  %v361 = vpop.f32.mrf.mxu0
  %v362 = vadd.f32 %v217, %v361
  %363 = vmatmul.bf16.gmra.mxu0 %v267
  %v364 = vpop.f32.mrf.mxu0
  %v365 = vadd.f32 %v220, %v364
  %v366 = vpop.f32.mrf.mxu0
  %v367 = vadd.f32 %v222, %v366
  %368 = vmatmul.bf16.gmra.mxu0 %v268
  %v369 = vpop.f32.mrf.mxu0
  %v370 = vadd.f32 %v225, %v369
  %v371 = vpop.f32.mrf.mxu0
  %v372 = vadd.f32 %v227, %v371
  %373 = vdwg.mxu0
  %v374 = vld [vmem:[%s4] sm:$0x1]
  %v376 = vperm.slane %v374, 0
  %v378 = vadd.f32 %v335, %v376
  %v379 = vadd.f32 %v337, %v376
  %v380 = vadd.f32 %v340, %v376
  %v381 = vadd.f32 %v342, %v376
  %v382 = vadd.f32 %v345, %v376
  %v383 = vadd.f32 %v347, %v376
  %v384 = vadd.f32 %v350, %v376
  %v385 = vadd.f32 %v352, %v376
  %v386 = vadd.f32 %v355, %v376
  %v387 = vadd.f32 %v357, %v376
  %v388 = vadd.f32 %v360, %v376
  %v389 = vadd.f32 %v362, %v376
  %v390 = vadd.f32 %v365, %v376
  %v391 = vadd.f32 %v367, %v376
  %v392 = vadd.f32 %v370, %v376
  %v393 = vadd.f32 %v372, %v376
  %v394 = vmax.f32 %v378, 0.0
  %v395 = vmax.f32 %v379, 0.0
  %v396 = vmax.f32 %v380, 0.0
  %v397 = vmax.f32 %v381, 0.0
  %v398 = vmax.f32 %v382, 0.0
  %v399 = vmax.f32 %v383, 0.0
  %v400 = vmax.f32 %v384, 0.0
  %v401 = vmax.f32 %v385, 0.0
  %v402 = vmax.f32 %v386, 0.0
  %v403 = vmax.f32 %v387, 0.0
  %v404 = vmax.f32 %v388, 0.0
  %v405 = vmax.f32 %v389, 0.0
  %v406 = vmax.f32 %v390, 0.0
  %v407 = vmax.f32 %v391, 0.0
  %v408 = vmax.f32 %v392, 0.0
  %v409 = vmax.f32 %v393, 0.0
  %v410 = vpack.c.bf16 %v394, %v394
  %v411 = vpack.c.bf16 %v395, %v395
  %v412 = vpack.c.bf16 %v396, %v396
  %v413 = vpack.c.bf16 %v397, %v397
  %v414 = vpack.c.bf16 %v398, %v398
  %v415 = vpack.c.bf16 %v399, %v399
  %v416 = vpack.c.bf16 %v400, %v400
  %v417 = vpack.c.bf16 %v401, %v401
  %v418 = vpack.c.bf16 %v402, %v402
  %v419 = vpack.c.bf16 %v403, %v403
  %v420 = vpack.c.bf16 %v404, %v404
  %v421 = vpack.c.bf16 %v405, %v405
  %v422 = vpack.c.bf16 %v406, %v406
  %v423 = vpack.c.bf16 %v407, %v407
  %v424 = vpack.c.bf16 %v408, %v408
  %v425 = vpack.c.bf16 %v409, %v409
  %426 = vst [vmem:[%s5] sm:$0xf] %v410
  %427 = vst [vmem:[%s5 + $0x4] sm:$0xf] %v411
  %428 = vst [vmem:[%s5 + $0x8] sm:$0xf] %v412
  %429 = vst [vmem:[%s5 + $0xc] sm:$0xf] %v413
  %430 = vst [vmem:[%s5 + $0x10] sm:$0xf] %v414
  %431 = vst [vmem:[%s5 + $0x14] sm:$0xf] %v415
  %432 = vst [vmem:[%s5 + $0x18] sm:$0xf] %v416
  %433 = vst [vmem:[%s5 + $0x1c] sm:$0xf] %v417
  %434 = vst [vmem:[%s5 + $0x20] sm:$0xf] %v418
  %435 = vst [vmem:[%s5 + $0x24] sm:$0xf] %v419
  %436 = vst [vmem:[%s5 + $0x28] sm:$0xf] %v420
  %437 = vst [vmem:[%s5 + $0x2c] sm:$0xf] %v421
  %438 = vst [vmem:[%s5 + $0x30] sm:$0xf] %v422
  %439 = vst [vmem:[%s5 + $0x34] sm:$0xf] %v423
  %440 = vst [vmem:[%s5 + $0x38] sm:$0xf] %v424
  %441 = vst [vmem:[%s5 + $0x3c] sm:$0xf] %v425
  // Predicated region
  $region22: #{bottleneck_forward.5} parent=0 // pred_check
    _
  $region23: #{bottleneck_forward.5} parent=0 // pred_check_branch
    %443 = sbr.rel (0) target = $region25
  $region24: #{bottleneck_forward.5} parent=0 // pred_region
    _
  $region25: #{bottleneck_forward.5} parent=0 // pred_fallthru
    _
  // Predicated region
  $region26: #{bottleneck_forward.5} parent=0 // pred_check
    _
  $region27: #{bottleneck_forward.5} parent=0 // pred_check_branch
    %445 = sbr.rel (0) target = $region29
  $region28: #{bottleneck_forward.5} parent=0 // pred_region
    _
  $region29: #{bottleneck_forward.5} parent=0 // pred_fallthru
    _

// kernel: bottleneck_forward.4
$region0: #{bottleneck_forward.4}
  #allocation0 [shape = 'u32[]', space=smem, size = 0x4, offset = 0x4, fixed_abs, tag = 'smem constant byte address 0x4 - core index']
  #allocation1 [shape = 'u32[72,128]{1,0:T(1,128)}', space=vmem, size = 0x9000, scoped, tag = 'internal scratch']
  %s0 = inlined_call_operand.vmem [shape: bf16[2,576,128], index: 0, kind: input, shape index: {}]
  %s1 = inlined_call_operand.vmem [shape: bf16[9,128,128], index: 1, kind: input, shape index: {}]
  %s2 = inlined_call_operand.vmem [shape: f32[1,128], index: 2, kind: input, shape index: {}]
  %s3 = inlined_call_operand.vmem [shape: bf16[2,8,8,128], index: 3, kind: output, shape index: {}]
  %s4 = sld [smem:[#allocation0]]
  $region45: #{bottleneck_forward.4} parent=0
    _
  %s6 = ssub.s32 1, %s4
  %s7 = scalar_select 0, %s6, %s4
  loop: start=0, step=1, limit=4
  $region2: #{bottleneck_forward.4} parent=0 // loop_pre_header
    _
  $region3: #{bottleneck_forward.4} parent=0 // loop_header
    %s9 = sphi 0, %s13
    %p10 = scmp.ge.s32.totalorder %s9, 4
    %s16 = sphi 0, %s28
    %s17 = sphi 0, %s24
    %s18 = sphi 0, %s16
    %s19 = sphi 0, %s17
    %s20 = sphi 0, %s18
    %s21 = sphi 0, %s19
    %s31 = sphi 0, %s33
    %s34 = sphi 0, %s31
    %s35 = sphi 0, %s34
    %s51 = sphi 0, %s35
    %s55 = sphi 0, %s55
    %s57 = sphi 0, %s55
    %s58 = sphi 0, %s57
    %s72 = sphi 0, %s58
    %s76 = sphi 0, %s76
    %s78 = sphi 0, %s76
    %s79 = sphi 0, %s78
    %s93 = sphi 0, %s79
    %s101 = sphi 0, %s103
    %s104 = sphi 0, %s101
    %s105 = sphi 0, %s104
    %s121 = sphi 0, %s105
  $region4: #{bottleneck_forward.4} parent=0 // loop_header_branch
    %12 = sbr.rel (%p10) target = $region8
  $region5: #{bottleneck_forward.4} parent=0 // loop_body
    %s14 = ssub.s32 %s9, 1
    %s15 = ssub.s32 %s9, 2
    %s22 = sadd.s32 1, %s17
    %p23 = scmp.ge.s32.totalorder %s22, 1
    %s24 = scalar_select %p23, 0, %s22
    %s25 = sadd.s32 1, %s16
    %s26 = scalar_select %p23, %s25, %s16
    %p27 = scmp.ge.s32.totalorder %s26, 2
    %s28 = scalar_select %p27, 0, %s26
    %s29 = ssub.s32 %s16, %s28
    %p30 = scmp.eq.s32.totalorder %s29, 0
    %s32 = sadd.s32 %s31, 1
    %s33 = scalar_select %p30, %s31, %s32
    %p36 = pneg %p30
    %p37 = scmp.eq.s32.totalorder %s9, 1
    %p38 = por %p36, %p37
    %p39 = scmp.ne.s32.totalorder %s31, %s34
    %p40 = scmp.eq.s32.totalorder %s9, 0
    %p41 = por %p39, %p40
    %p42 = scmp.ne.s32.totalorder %s31, %s34
    %p43 = scmp.eq.s32.totalorder %s14, 1
    %p44 = por %p42, %p43
    %p45 = scmp.ne.s32.totalorder %s34, %s35
    %p46 = scmp.eq.s32.totalorder %s14, 0
    %p47 = por %p45, %p46
    %p48 = scmp.ne.s32.totalorder %s34, %s35
    %p49 = scmp.eq.s32.totalorder %s15, 1
    %p50 = por %p48, %p49
    %p52 = scmp.ne.s32.totalorder %s35, %s51
    %p53 = scmp.eq.s32.totalorder %s15, 0
    %p54 = por %p52, %p53
    %s56 = sadd.s32 %s55, 1
    %p59 = scmp.eq.s32.totalorder %s9, 1
    %p60 = scmp.ne.s32.totalorder %s55, %s57
    %p61 = scmp.eq.s32.totalorder %s9, 0
    %p62 = por %p60, %p61
    %p63 = scmp.ne.s32.totalorder %s55, %s57
    %p64 = scmp.eq.s32.totalorder %s14, 1
    %p65 = por %p63, %p64
    %p66 = scmp.ne.s32.totalorder %s57, %s58
    %p67 = scmp.eq.s32.totalorder %s14, 0
    %p68 = por %p66, %p67
    %p69 = scmp.ne.s32.totalorder %s57, %s58
    %p70 = scmp.eq.s32.totalorder %s15, 1
    %p71 = por %p69, %p70
    %p73 = scmp.ne.s32.totalorder %s58, %s72
    %p74 = scmp.eq.s32.totalorder %s15, 0
    %p75 = por %p73, %p74
    %s77 = sadd.s32 %s76, 1
    %p80 = scmp.eq.s32.totalorder %s9, 1
    %p81 = scmp.ne.s32.totalorder %s76, %s78
    %p82 = scmp.eq.s32.totalorder %s9, 0
    %p83 = por %p81, %p82
    %p84 = scmp.ne.s32.totalorder %s76, %s78
    %p85 = scmp.eq.s32.totalorder %s14, 1
    %p86 = por %p84, %p85
    %p87 = scmp.ne.s32.totalorder %s78, %s79
    %p88 = scmp.eq.s32.totalorder %s14, 0
    %p89 = por %p87, %p88
    %p90 = scmp.ne.s32.totalorder %s78, %s79
    %p91 = scmp.eq.s32.totalorder %s15, 1
    %p92 = por %p90, %p91
    %p94 = scmp.ne.s32.totalorder %s79, %s93
    %p95 = scmp.eq.s32.totalorder %s15, 0
    %p96 = por %p94, %p95
    %s97 = ssub.s32 %s16, %s28
    %s98 = ssub.s32 %s17, %s24
    %s99 = sor.u32 %s97, %s98
    %p100 = scmp.eq.s32.totalorder %s99, 0
    %s102 = sadd.s32 %s101, 1
    %s103 = scalar_select %p100, %s101, %s102
    %p106 = pneg %p100
    %p107 = scmp.eq.s32.totalorder %s9, 1
    %p108 = por %p106, %p107
    %p109 = scmp.ne.s32.totalorder %s101, %s104
    %p110 = scmp.eq.s32.totalorder %s9, 0
    %p111 = por %p109, %p110
    %p112 = scmp.ne.s32.totalorder %s101, %s104
    %p113 = scmp.eq.s32.totalorder %s14, 1
    %p114 = por %p112, %p113
    %p115 = scmp.ne.s32.totalorder %s104, %s105
    %p116 = scmp.eq.s32.totalorder %s14, 0
    %p117 = por %p115, %p116
    %p118 = scmp.ne.s32.totalorder %s104, %s105
    %p119 = scmp.eq.s32.totalorder %s15, 1
    %p120 = por %p118, %p119
    %p122 = scmp.ne.s32.totalorder %s105, %s121
    %p123 = scmp.eq.s32.totalorder %s15, 0
    %p124 = por %p122, %p123
    %p125 = scmp.le.s32.totalorder 1, %s9
    %p126 = scmp.lt.s32.totalorder %s9, 3
    %p127 = pnand %p125, %p126
    %p128 = pneg %p127
    // Predicated region
    $region9: #{bottleneck_forward.4} parent=5 // pred_check
      _
    $region10: #{bottleneck_forward.4} parent=5 // pred_check_branch
      %130 = sbr.rel (%p127) target = $region12
    $region11: #{bottleneck_forward.4} parent=5 // pred_region
      %s131 = ssub.s32 %s9, 1
      // Predicated region
      $region13: #{bottleneck_forward.4} parent=11 // pred_check
        %p132 = pneg %p68
      $region14: #{bottleneck_forward.4} parent=11 // pred_check_branch
        %134 = sbr.rel (%p132) target = $region16
      $region15: #{bottleneck_forward.4} parent=11 // pred_region
        _
      $region16: #{bottleneck_forward.4} parent=11 // pred_fallthru
        _
      // Predicated region
      $region17: #{bottleneck_forward.4} parent=11 // pred_check
        %p135 = pneg %p89
      $region18: #{bottleneck_forward.4} parent=11 // pred_check_branch
        %137 = sbr.rel (%p135) target = $region20
      $region19: #{bottleneck_forward.4} parent=11 // pred_region
        _
      $region20: #{bottleneck_forward.4} parent=11 // pred_fallthru
        _
    $region12: #{bottleneck_forward.4} parent=5 // pred_fallthru
      _
    %p138 = scmp.lt.s32.totalorder %s9, 2
    // Predicated region
    $region21: #{bottleneck_forward.4} parent=5 // pred_check
      %p139 = pneg %p138
    $region22: #{bottleneck_forward.4} parent=5 // pred_check_branch
      %141 = sbr.rel (%p139) target = $region24
    $region23: #{bottleneck_forward.4} parent=5 // pred_region
      // Predicated region
      $region25: #{bottleneck_forward.4} parent=23 // pred_check
        %p142 = pneg %p41
      $region26: #{bottleneck_forward.4} parent=23 // pred_check_branch
        %144 = sbr.rel (%p142) target = $region28
      $region27: #{bottleneck_forward.4} parent=23 // pred_region
        %p145 = scmp.lt.s32.totalorder %s16, 1
        %s146 = scalar_select %p145, %s16, 1
        %s147 = smul.addr %s146, 72
        %s148 = smul.addr %s147, 4
        %s149 = scalar_lea.vmem %s0, %s148
      $region28: #{bottleneck_forward.4} parent=23 // pred_fallthru
        _
    $region24: #{bottleneck_forward.4} parent=5 // pred_fallthru
      _
    %p150 = scmp.le.s32.totalorder 1, %s9
    %p151 = scmp.lt.s32.totalorder %s9, 3
    %p152 = pnand %p150, %p151
    %p153 = pneg %p152
    // Predicated region
    $region29: #{bottleneck_forward.4} parent=5 // pred_check
      _
    $region30: #{bottleneck_forward.4} parent=5 // pred_check_branch
      %155 = sbr.rel (%p152) target = $region32
    $region31: #{bottleneck_forward.4} parent=5 // pred_region
      %s156 = ssub.s32 %s9, 1
      %p157 = scmp.lt.s32.totalorder %s18, 1
      %s158 = scalar_select %p157, %s18, 1
      %s159 = smul.addr %s158, 72
      %s160 = smul.addr %s159, 4
      %s161 = scalar_lea.vmem %s0, %s160
      %p162 = pneg %p47
      %p163 = pneg %p44
      %p164 = pneg %p68
      %p165 = pneg %p65
      %p166 = pneg %p89
      %p167 = pneg %p86
      %p168 = pneg %p117
      %p169 = pneg %p114
      %s170 = smul.u32 8, %s19
      %p171 = scmp.lt.s32.totalorder %s18, 1
      %s172 = scalar_select %p171, %s18, 1
      %p173 = scmp.lt.s32.totalorder %s170, 7
      %s174 = scalar_select %p173, %s170, 7
      %s175 = smul.addr %s172, 8
      %s176 = sadd.s32 %s174, %s175
      %s177 = smul.addr %s176, 4
      %s178 = scalar_lea.vmem %s3, %s177
      %p179 = scmp.lt.s32.totalorder %s18, 1
      %s180 = scalar_select %p179, %s18, 1
      %s181 = smul.addr %s180, 72
      %s182 = smul.addr %s181, 4
      %s183 = scalar_lea.vmem %s0, %s182
      %s184 = smul.u32 8, %s19
      %p185 = scmp.lt.s32.totalorder %s18, 1
      %s186 = scalar_select %p185, %s18, 1
      %p187 = scmp.lt.s32.totalorder %s184, 7
      %s188 = scalar_select %p187, %s184, 7
      %s189 = smul.addr %s186, 8
      %s190 = sadd.s32 %s188, %s189
      %s191 = smul.addr %s190, 4
      %s192 = scalar_lea.vmem %s3, %s191
      %s193 = smul.u32 8, %s19
      %s194 = smul.u32 %s19, 128
      %s195 = sshra.s32 %s194, 3
      %s196 = sand.u32 %s194, 7
      %s197 = smul.addr %s195, 4
      %s198 = scalar_lea.vmem %s183, %s197
      %v199 = vld [vmem:[%s198] sm:$0xf]
      %v200 = vld [vmem:[%s198 + $0x4] sm:$0xf]
      %v201 = vld [vmem:[%s198 + $0x8] sm:$0xf]
      %v202 = vld [vmem:[%s198 + $0xc] sm:$0xf]
      %v203 = vld [vmem:[%s198 + $0x10] sm:$0xf]
      %v204 = vld [vmem:[%s198 + $0x14] sm:$0xf]
      %v205 = vld [vmem:[%s198 + $0x18] sm:$0xf]
      %v206 = vld [vmem:[%s198 + $0x1c] sm:$0xf]
      %v207 = vld [vmem:[%s198 + $0x20] sm:$0xf]
      %v208 = vld [vmem:[%s198 + $0x24] sm:$0xf]
      %v209 = vld [vmem:[%s198 + $0x28] sm:$0xf]
      %v210 = vld [vmem:[%s198 + $0x2c] sm:$0xf]
      %v211 = vld [vmem:[%s198 + $0x30] sm:$0xf]
      %v212 = vld [vmem:[%s198 + $0x34] sm:$0xf]
      %v213 = vld [vmem:[%s198 + $0x38] sm:$0xf]
      %v214 = vld [vmem:[%s198 + $0x3c] sm:$0xf]
      %v215 = vld [vmem:[%s198 + $0x40] sm:$0xf]
      %v216 = vld [vmem:[%s198 + $0x44] sm:$0xf]
      %v217 = vld [vmem:[%s1] sm:$0xf]
      %v218 = vld [vmem:[%s1 + $0x4] sm:$0xf]
      %v219 = vld [vmem:[%s1 + $0x8] sm:$0xf]
      %v220 = vld [vmem:[%s1 + $0xc] sm:$0xf]
      %v221 = vld [vmem:[%s1 + $0x10] sm:$0xf]
      %v222 = vld [vmem:[%s1 + $0x14] sm:$0xf]
      %v223 = vld [vmem:[%s1 + $0x18] sm:$0xf]
      %v224 = vld [vmem:[%s1 + $0x1c] sm:$0xf]
      %v225 = vld [vmem:[%s1 + $0x20] sm:$0xf]
      %v226 = vld [vmem:[%s1 + $0x24] sm:$0xf]
      %v227 = vld [vmem:[%s1 + $0x28] sm:$0xf]
      %v228 = vld [vmem:[%s1 + $0x2c] sm:$0xf]
      %v229 = vld [vmem:[%s1 + $0x30] sm:$0xf]
      %v230 = vld [vmem:[%s1 + $0x34] sm:$0xf]
      %v231 = vld [vmem:[%s1 + $0x38] sm:$0xf]
      %v232 = vld [vmem:[%s1 + $0x3c] sm:$0xf]
      %v251 = vunpack.c.l.b16 %v199
      %v252 = vunpack.c.l.b16 %v200
      %v253 = vunpack.c.l.b16 %v201
      %v254 = vunpack.c.l.b16 %v202
      %v255 = vunpack.c.l.b16 %v203
      %v256 = vunpack.c.l.b16 %v204
      %v257 = vunpack.c.l.b16 %v205
      %v258 = vunpack.c.l.b16 %v206
      %v259 = vunpack.c.l.b16 %v207
      %v260 = vunpack.c.l.b16 %v208
      %v261 = vunpack.c.l.b16 %v209
      %v262 = vunpack.c.l.b16 %v210
      %v263 = vunpack.c.l.b16 %v211
      %v264 = vunpack.c.l.b16 %v212
      %v265 = vunpack.c.l.b16 %v213
      %v266 = vunpack.c.l.b16 %v214
      %v267 = vunpack.c.l.b16 %v215
      %v268 = vunpack.c.l.b16 %v216
      %v269 = vpack.c.b16 %v252, %v251
      %v270 = vpack.c.b16 %v254, %v253
      %v271 = vpack.c.b16 %v256, %v255
      %v272 = vpack.c.b16 %v258, %v257
      %v273 = vpack.c.b16 %v260, %v259
      %v274 = vpack.c.b16 %v262, %v261
      %v275 = vpack.c.b16 %v264, %v263
      %v276 = vpack.c.b16 %v266, %v265
      %v277 = vpack.c.b16 %v268, %v267
      %v303 = vunpack.c.l.b16 %v217
      %v304 = vunpack.c.l.b16 %v218
      %v305 = vunpack.c.l.b16 %v219
      %v306 = vunpack.c.l.b16 %v220
      %v307 = vunpack.c.l.b16 %v221
      %v308 = vunpack.c.l.b16 %v222
      %v309 = vunpack.c.l.b16 %v223
      %v310 = vunpack.c.l.b16 %v224
      %v311 = vunpack.c.l.b16 %v225
      %v312 = vunpack.c.l.b16 %v226
      %v313 = vunpack.c.l.b16 %v227
      %v314 = vunpack.c.l.b16 %v228
      %v315 = vunpack.c.l.b16 %v229
      %v316 = vunpack.c.l.b16 %v230
      %v317 = vunpack.c.l.b16 %v231
      %v318 = vunpack.c.l.b16 %v232
      %v319 = vpack.c.b16 %v304, %v303
      %v320 = vpack.c.b16 %v306, %v305
      %v321 = vpack.c.b16 %v308, %v307
      %v322 = vpack.c.b16 %v310, %v309
      %v323 = vpack.c.b16 %v312, %v311
      %v324 = vpack.c.b16 %v314, %v313
      %v325 = vpack.c.b16 %v316, %v315
      %v326 = vpack.c.b16 %v318, %v317
      %335 = vmatpush.bf16.msra.mxu0 %v326
      %336 = vmatpush.bf16.msra.mxu0 %v325
      %337 = vmatpush.bf16.msra.mxu0 %v324
      %338 = vmatpush.bf16.msra.mxu0 %v323
      %339 = vmatpush.bf16.msra.mxu0 %v322
      %340 = vmatpush.bf16.msra.mxu0 %v321
      %341 = vmatpush.bf16.msra.mxu0 %v320
      %342 = vmatpush.bf16.msra.mxu0 %v319
      %343 = vmatmul.bf16.gmra.mxu0 %v269
      %v344 = vpop.f32.mrf.mxu0
      %v345 = vadd.f32 0.0, %v344
      %v346 = vpop.f32.mrf.mxu0
      %347 = vmatmul.bf16.gmra.mxu0 %v270
      %v348 = vpop.f32.mrf.mxu0
      %v349 = vadd.f32 0.0, %v348
      %v350 = vpop.f32.mrf.mxu0
      %351 = vmatmul.bf16.gmra.mxu0 %v271
      %v352 = vpop.f32.mrf.mxu0
      %v353 = vadd.f32 0.0, %v352
      %v354 = vpop.f32.mrf.mxu0
      %355 = vmatmul.bf16.gmra.mxu0 %v272
      %v356 = vpop.f32.mrf.mxu0
      %v357 = vadd.f32 0.0, %v356
      %v358 = vpop.f32.mrf.mxu0
      %359 = vmatmul.bf16.gmra.mxu0 %v273
      %v360 = vpop.f32.mrf.mxu0
      %v361 = vadd.f32 0.0, %v360
      %v362 = vpop.f32.mrf.mxu0
      %363 = vmatmul.bf16.gmra.mxu0 %v274
      %v364 = vpop.f32.mrf.mxu0
      %v365 = vadd.f32 0.0, %v364
      %v366 = vpop.f32.mrf.mxu0
      %367 = vmatmul.bf16.gmra.mxu0 %v275
      %v368 = vpop.f32.mrf.mxu0
      %v369 = vadd.f32 0.0, %v368
      %v370 = vpop.f32.mrf.mxu0
      %371 = vmatmul.bf16.gmra.mxu0 %v276
      %v372 = vpop.f32.mrf.mxu0
      %v373 = vadd.f32 0.0, %v372
      %v374 = vpop.f32.mrf.mxu0
      %375 = vmatmul.bf16.gmra.mxu0 %v277
      %v376 = vpop.f32.mrf.mxu0
      %v377 = vpop.f32.mrf.mxu0
      %378 = vdwg.mxu0
      %s379 = sadd.s32 %s194, 144
      %s380 = sshra.s32 %s379, 3
      %s381 = sand.u32 %s379, 7
      %s382 = smul.addr %s380, 4
      %s383 = scalar_lea.vmem %s183, %s382
      %v384 = vld [vmem:[%s383] sm:$0xf]
      %v385 = vld [vmem:[%s383 + $0x4] sm:$0xf]
      %v386 = vld [vmem:[%s383 + $0x8] sm:$0xf]
      %v387 = vld [vmem:[%s383 + $0xc] sm:$0xf]
      %v388 = vld [vmem:[%s383 + $0x10] sm:$0xf]
      %v389 = vld [vmem:[%s383 + $0x14] sm:$0xf]
      %v390 = vld [vmem:[%s383 + $0x18] sm:$0xf]
      %v391 = vld [vmem:[%s383 + $0x1c] sm:$0xf]
      %v392 = vld [vmem:[%s383 + $0x20] sm:$0xf]
      %v393 = vld [vmem:[%s383 + $0x24] sm:$0xf]
      %v394 = vld [vmem:[%s383 + $0x28] sm:$0xf]
      %v395 = vld [vmem:[%s383 + $0x2c] sm:$0xf]
      %v396 = vld [vmem:[%s383 + $0x30] sm:$0xf]
      %v397 = vld [vmem:[%s383 + $0x34] sm:$0xf]
      %v398 = vld [vmem:[%s383 + $0x38] sm:$0xf]
      %v399 = vld [vmem:[%s383 + $0x3c] sm:$0xf]
      %v400 = vld [vmem:[%s383 + $0x40] sm:$0xf]
      %v401 = vld [vmem:[%s383 + $0x44] sm:$0xf]
      %s402 = scalar_lea.vmem %s1, 64
      %v403 = vld [vmem:[%s402] sm:$0xf]
      %v404 = vld [vmem:[%s402 + $0x4] sm:$0xf]
      %v405 = vld [vmem:[%s402 + $0x8] sm:$0xf]
      %v406 = vld [vmem:[%s402 + $0xc] sm:$0xf]
      %v407 = vld [vmem:[%s402 + $0x10] sm:$0xf]
      %v408 = vld [vmem:[%s402 + $0x14] sm:$0xf]
      %v409 = vld [vmem:[%s402 + $0x18] sm:$0xf]
      %v410 = vld [vmem:[%s402 + $0x1c] sm:$0xf]
      %v411 = vld [vmem:[%s402 + $0x20] sm:$0xf]
      %v412 = vld [vmem:[%s402 + $0x24] sm:$0xf]
      %v413 = vld [vmem:[%s402 + $0x28] sm:$0xf]
      %v414 = vld [vmem:[%s402 + $0x2c] sm:$0xf]
      %v415 = vld [vmem:[%s402 + $0x30] sm:$0xf]
      %v416 = vld [vmem:[%s402 + $0x34] sm:$0xf]
      %v417 = vld [vmem:[%s402 + $0x38] sm:$0xf]
      %v418 = vld [vmem:[%s402 + $0x3c] sm:$0xf]
      %v437 = vunpack.c.l.b16 %v384
      %v438 = vunpack.c.l.b16 %v385
      %v439 = vunpack.c.l.b16 %v386
      %v440 = vunpack.c.l.b16 %v387
      %v441 = vunpack.c.l.b16 %v388
      %v442 = vunpack.c.l.b16 %v389
      %v443 = vunpack.c.l.b16 %v390
      %v444 = vunpack.c.l.b16 %v391
      %v445 = vunpack.c.l.b16 %v392
      %v446 = vunpack.c.l.b16 %v393
      %v447 = vunpack.c.l.b16 %v394
      %v448 = vunpack.c.l.b16 %v395
      %v449 = vunpack.c.l.b16 %v396
      %v450 = vunpack.c.l.b16 %v397
      %v451 = vunpack.c.l.b16 %v398
      %v452 = vunpack.c.l.b16 %v399
      %v453 = vunpack.c.l.b16 %v400
      %v454 = vunpack.c.l.b16 %v401
      %v455 = vpack.c.b16 %v438, %v437
      %v456 = vpack.c.b16 %v440, %v439
      %v457 = vpack.c.b16 %v442, %v441
      %v458 = vpack.c.b16 %v444, %v443
      %v459 = vpack.c.b16 %v446, %v445
      %v460 = vpack.c.b16 %v448, %v447
      %v461 = vpack.c.b16 %v450, %v449
      %v462 = vpack.c.b16 %v452, %v451
      %v463 = vpack.c.b16 %v454, %v453
      %v489 = vunpack.c.l.b16 %v403
      %v490 = vunpack.c.l.b16 %v404
      %v491 = vunpack.c.l.b16 %v405
      %v492 = vunpack.c.l.b16 %v406
      %v493 = vunpack.c.l.b16 %v407
      %v494 = vunpack.c.l.b16 %v408
      %v495 = vunpack.c.l.b16 %v409
      %v496 = vunpack.c.l.b16 %v410
      %v497 = vunpack.c.l.b16 %v411
      %v498 = vunpack.c.l.b16 %v412
      %v499 = vunpack.c.l.b16 %v413
      %v500 = vunpack.c.l.b16 %v414
      %v501 = vunpack.c.l.b16 %v415
      %v502 = vunpack.c.l.b16 %v416
      %v503 = vunpack.c.l.b16 %v417
      %v504 = vunpack.c.l.b16 %v418
      %v505 = vpack.c.b16 %v490, %v489
      %v506 = vpack.c.b16 %v492, %v491
      %v507 = vpack.c.b16 %v494, %v493
      %v508 = vpack.c.b16 %v496, %v495
      %v509 = vpack.c.b16 %v498, %v497
      %v510 = vpack.c.b16 %v500, %v499
      %v511 = vpack.c.b16 %v502, %v501
      %v512 = vpack.c.b16 %v504, %v503
      %521 = vmatpush.bf16.msra.mxu0 %v512
      %522 = vmatpush.bf16.msra.mxu0 %v511
      %523 = vmatpush.bf16.msra.mxu0 %v510
      %524 = vmatpush.bf16.msra.mxu0 %v509
      %525 = vmatpush.bf16.msra.mxu0 %v508
      %526 = vmatpush.bf16.msra.mxu0 %v507
      %527 = vmatpush.bf16.msra.mxu0 %v506
      %528 = vmatpush.bf16.msra.mxu0 %v505
      %529 = vmatmul.bf16.gmra.mxu0 %v455
      %v530 = vpop.f32.mrf.mxu0
      %v531 = vadd.f32 0.0, %v530
      %v532 = vpop.f32.mrf.mxu0
      %533 = vmatmul.bf16.gmra.mxu0 %v456
      %v534 = vpop.f32.mrf.mxu0
      %v535 = vadd.f32 0.0, %v534
      %v536 = vpop.f32.mrf.mxu0
      %537 = vmatmul.bf16.gmra.mxu0 %v457
      %v538 = vpop.f32.mrf.mxu0
      %v539 = vadd.f32 0.0, %v538
      %v540 = vpop.f32.mrf.mxu0
      %541 = vmatmul.bf16.gmra.mxu0 %v458
      %v542 = vpop.f32.mrf.mxu0
      %v543 = vadd.f32 0.0, %v542
      %v544 = vpop.f32.mrf.mxu0
      %545 = vmatmul.bf16.gmra.mxu0 %v459
      %v546 = vpop.f32.mrf.mxu0
      %v547 = vadd.f32 0.0, %v546
      %v548 = vpop.f32.mrf.mxu0
      %549 = vmatmul.bf16.gmra.mxu0 %v460
      %v550 = vpop.f32.mrf.mxu0
      %v551 = vadd.f32 0.0, %v550
      %v552 = vpop.f32.mrf.mxu0
      %553 = vmatmul.bf16.gmra.mxu0 %v461
      %v554 = vpop.f32.mrf.mxu0
      %v555 = vadd.f32 0.0, %v554
      %v556 = vpop.f32.mrf.mxu0
      %557 = vmatmul.bf16.gmra.mxu0 %v462
      %v558 = vpop.f32.mrf.mxu0
      %v559 = vadd.f32 0.0, %v558
      %v560 = vpop.f32.mrf.mxu0
      %561 = vmatmul.bf16.gmra.mxu0 %v463
      %v562 = vpop.f32.mrf.mxu0
      %v563 = vpop.f32.mrf.mxu0
      %564 = vdwg.mxu0
      %v565 = vadd.f32 %v345, %v531
      %v566 = vadd.f32 %v349, %v535
      %v567 = vadd.f32 %v353, %v539
      %v568 = vadd.f32 %v357, %v543
      %v569 = vadd.f32 %v361, %v547
      %v570 = vadd.f32 %v365, %v551
      %v571 = vadd.f32 %v369, %v555
      %v572 = vadd.f32 %v373, %v559
      %s573 = scalar_lea.vmem %s1, 128
      %v574 = vld [vmem:[%s573] sm:$0xf]
      %v575 = vld [vmem:[%s573 + $0x4] sm:$0xf]
      %v576 = vld [vmem:[%s573 + $0x8] sm:$0xf]
      %v577 = vld [vmem:[%s573 + $0xc] sm:$0xf]
      %v578 = vld [vmem:[%s573 + $0x10] sm:$0xf]
      %v579 = vld [vmem:[%s573 + $0x14] sm:$0xf]
      %v580 = vld [vmem:[%s573 + $0x18] sm:$0xf]
      %v581 = vld [vmem:[%s573 + $0x1c] sm:$0xf]
      %v582 = vld [vmem:[%s573 + $0x20] sm:$0xf]
      %v583 = vld [vmem:[%s573 + $0x24] sm:$0xf]
      %v584 = vld [vmem:[%s573 + $0x28] sm:$0xf]
      %v585 = vld [vmem:[%s573 + $0x2c] sm:$0xf]
      %v586 = vld [vmem:[%s573 + $0x30] sm:$0xf]
      %v587 = vld [vmem:[%s573 + $0x34] sm:$0xf]
      %v588 = vld [vmem:[%s573 + $0x38] sm:$0xf]
      %v589 = vld [vmem:[%s573 + $0x3c] sm:$0xf]
      %v606 = vunpack.c.l.b16 %v574
      %v607 = vunpack.c.l.b16 %v575
      %v608 = vunpack.c.l.b16 %v576
      %v609 = vunpack.c.l.b16 %v577
      %v610 = vunpack.c.l.b16 %v578
      %v611 = vunpack.c.l.b16 %v579
      %v612 = vunpack.c.l.b16 %v580
      %v613 = vunpack.c.l.b16 %v581
      %v614 = vunpack.c.l.b16 %v582
      %v615 = vunpack.c.l.b16 %v583
      %v616 = vunpack.c.l.b16 %v584
      %v617 = vunpack.c.l.b16 %v585
      %v618 = vunpack.c.l.b16 %v586
      %v619 = vunpack.c.l.b16 %v587
      %v620 = vunpack.c.l.b16 %v588
      %v621 = vunpack.c.l.b16 %v589
      %v622 = vpack.c.b16 %v607, %v606
      %v623 = vpack.c.b16 %v609, %v608
      %v624 = vpack.c.b16 %v611, %v610
      %v625 = vpack.c.b16 %v613, %v612
      %v626 = vpack.c.b16 %v615, %v614
      %v627 = vpack.c.b16 %v617, %v616
      %v628 = vpack.c.b16 %v619, %v618
      %v629 = vpack.c.b16 %v621, %v620
      %638 = vmatpush.bf16.msra.mxu0 %v629
      %639 = vmatpush.bf16.msra.mxu0 %v628
      %640 = vmatpush.bf16.msra.mxu0 %v627
      %641 = vmatpush.bf16.msra.mxu0 %v626
      %642 = vmatpush.bf16.msra.mxu0 %v625
      %643 = vmatpush.bf16.msra.mxu0 %v624
      %644 = vmatpush.bf16.msra.mxu0 %v623
      %645 = vmatpush.bf16.msra.mxu0 %v622
      %646 = vmatmul.bf16.gmra.mxu0 %v269
      %v647 = vpop.f32.mrf.mxu0
      %v648 = vadd.f32 0.0, %v647
      %v649 = vpop.f32.mrf.mxu0
      %v650 = vadd.f32 0.0, %v649
      %651 = vmatmul.bf16.gmra.mxu0 %v270
      %v652 = vpop.f32.mrf.mxu0
      %v653 = vadd.f32 0.0, %v652
      %v654 = vpop.f32.mrf.mxu0
      %v655 = vadd.f32 0.0, %v654
      %656 = vmatmul.bf16.gmra.mxu0 %v271
      %v657 = vpop.f32.mrf.mxu0
      %v658 = vadd.f32 0.0, %v657
      %v659 = vpop.f32.mrf.mxu0
      %v660 = vadd.f32 0.0, %v659
      %661 = vmatmul.bf16.gmra.mxu0 %v272
      %v662 = vpop.f32.mrf.mxu0
      %v663 = vadd.f32 0.0, %v662
      %v664 = vpop.f32.mrf.mxu0
      %v665 = vadd.f32 0.0, %v664
      %666 = vmatmul.bf16.gmra.mxu0 %v273
      %v667 = vpop.f32.mrf.mxu0
      %v668 = vadd.f32 0.0, %v667
      %v669 = vpop.f32.mrf.mxu0
      %v670 = vadd.f32 0.0, %v669
      %671 = vmatmul.bf16.gmra.mxu0 %v274
      %v672 = vpop.f32.mrf.mxu0
      %v673 = vadd.f32 0.0, %v672
      %v674 = vpop.f32.mrf.mxu0
      %v675 = vadd.f32 0.0, %v674
      %676 = vmatmul.bf16.gmra.mxu0 %v275
      %v677 = vpop.f32.mrf.mxu0
      %v678 = vadd.f32 0.0, %v677
      %v679 = vpop.f32.mrf.mxu0
      %v680 = vadd.f32 0.0, %v679
      %681 = vmatmul.bf16.gmra.mxu0 %v276
      %v682 = vpop.f32.mrf.mxu0
      %v683 = vadd.f32 0.0, %v682
      %v684 = vpop.f32.mrf.mxu0
      %v685 = vadd.f32 0.0, %v684
      %686 = vmatmul.bf16.gmra.mxu0 %v277
      %v687 = vpop.f32.mrf.mxu0
      %v688 = vpop.f32.mrf.mxu0
      %689 = vdwg.mxu0
      %vm706 = vcmask 1046528
      %v707 = vrot.slane %v648, 1
      %v708 = vrot.slane %v650, 1
      %v709 = vsel %vm706, %v707, %v708
      %v710 = vrot.slane %v653, 1
      %v711 = vrot.slane %v655, 1
      %v712 = vsel %vm706, %v710, %v711
      %v713 = vrot.slane %v658, 1
      %v714 = vrot.slane %v660, 1
      %v715 = vsel %vm706, %v713, %v714
      %v716 = vrot.slane %v663, 1
      %v717 = vrot.slane %v665, 1
      %v718 = vsel %vm706, %v716, %v717
      %v719 = vrot.slane %v668, 1
      %v720 = vrot.slane %v670, 1
      %v721 = vsel %vm706, %v719, %v720
      %v722 = vrot.slane %v673, 1
      %v723 = vrot.slane %v675, 1
      %v724 = vsel %vm706, %v722, %v723
      %v725 = vrot.slane %v678, 1
      %v726 = vrot.slane %v680, 1
      %v727 = vsel %vm706, %v725, %v726
      %v728 = vrot.slane %v683, 1
      %v729 = vrot.slane %v685, 1
      %v730 = vsel %vm706, %v728, %v729
      %v739 = vadd.f32 %v565, %v709
      %v740 = vadd.f32 %v566, %v712
      %v741 = vadd.f32 %v567, %v715
      %v742 = vadd.f32 %v568, %v718
      %v743 = vadd.f32 %v569, %v721
      %v744 = vadd.f32 %v570, %v724
      %v745 = vadd.f32 %v571, %v727
      %v746 = vadd.f32 %v572, %v730
      %s747 = sadd.s32 %s194, 288
      %s748 = sshra.s32 %s747, 3
      %s749 = sand.u32 %s747, 7
      %s750 = smul.addr %s748, 4
      %s751 = scalar_lea.vmem %s183, %s750
      %v752 = vld [vmem:[%s751] sm:$0xf]
      %v753 = vld [vmem:[%s751 + $0x4] sm:$0xf]
      %v754 = vld [vmem:[%s751 + $0x8] sm:$0xf]
      %v755 = vld [vmem:[%s751 + $0xc] sm:$0xf]
      %v756 = vld [vmem:[%s751 + $0x10] sm:$0xf]
      %v757 = vld [vmem:[%s751 + $0x14] sm:$0xf]
      %v758 = vld [vmem:[%s751 + $0x18] sm:$0xf]
      %v759 = vld [vmem:[%s751 + $0x1c] sm:$0xf]
      %v760 = vld [vmem:[%s751 + $0x20] sm:$0xf]
      %v761 = vld [vmem:[%s751 + $0x24] sm:$0xf]
      %v762 = vld [vmem:[%s751 + $0x28] sm:$0xf]
      %v763 = vld [vmem:[%s751 + $0x2c] sm:$0xf]
      %v764 = vld [vmem:[%s751 + $0x30] sm:$0xf]
      %v765 = vld [vmem:[%s751 + $0x34] sm:$0xf]
      %v766 = vld [vmem:[%s751 + $0x38] sm:$0xf]
      %v767 = vld [vmem:[%s751 + $0x3c] sm:$0xf]
      %v768 = vld [vmem:[%s751 + $0x40] sm:$0xf]
      %v769 = vld [vmem:[%s751 + $0x44] sm:$0xf]
      %s770 = scalar_lea.vmem %s1, 192
      %v771 = vld [vmem:[%s770] sm:$0xf]
      %v772 = vld [vmem:[%s770 + $0x4] sm:$0xf]
      %v773 = vld [vmem:[%s770 + $0x8] sm:$0xf]
      %v774 = vld [vmem:[%s770 + $0xc] sm:$0xf]
      %v775 = vld [vmem:[%s770 + $0x10] sm:$0xf]
      %v776 = vld [vmem:[%s770 + $0x14] sm:$0xf]
      %v777 = vld [vmem:[%s770 + $0x18] sm:$0xf]
      %v778 = vld [vmem:[%s770 + $0x1c] sm:$0xf]
      %v779 = vld [vmem:[%s770 + $0x20] sm:$0xf]
      %v780 = vld [vmem:[%s770 + $0x24] sm:$0xf]
      %v781 = vld [vmem:[%s770 + $0x28] sm:$0xf]
      %v782 = vld [vmem:[%s770 + $0x2c] sm:$0xf]
      %v783 = vld [vmem:[%s770 + $0x30] sm:$0xf]
      %v784 = vld [vmem:[%s770 + $0x34] sm:$0xf]
      %v785 = vld [vmem:[%s770 + $0x38] sm:$0xf]
      %v786 = vld [vmem:[%s770 + $0x3c] sm:$0xf]
      %v805 = vunpack.c.l.b16 %v752
      %v806 = vunpack.c.l.b16 %v753
      %v807 = vunpack.c.l.b16 %v754
      %v808 = vunpack.c.l.b16 %v755
      %v809 = vunpack.c.l.b16 %v756
      %v810 = vunpack.c.l.b16 %v757
      %v811 = vunpack.c.l.b16 %v758
      %v812 = vunpack.c.l.b16 %v759
      %v813 = vunpack.c.l.b16 %v760
      %v814 = vunpack.c.l.b16 %v761
      %v815 = vunpack.c.l.b16 %v762
      %v816 = vunpack.c.l.b16 %v763
      %v817 = vunpack.c.l.b16 %v764
      %v818 = vunpack.c.l.b16 %v765
      %v819 = vunpack.c.l.b16 %v766
      %v820 = vunpack.c.l.b16 %v767
      %v821 = vunpack.c.l.b16 %v768
      %v822 = vunpack.c.l.b16 %v769
      %v823 = vpack.c.b16 %v806, %v805
      %v824 = vpack.c.b16 %v808, %v807
      %v825 = vpack.c.b16 %v810, %v809
      %v826 = vpack.c.b16 %v812, %v811
      %v827 = vpack.c.b16 %v814, %v813
      %v828 = vpack.c.b16 %v816, %v815
      %v829 = vpack.c.b16 %v818, %v817
      %v830 = vpack.c.b16 %v820, %v819
      %v831 = vpack.c.b16 %v822, %v821
      %v857 = vunpack.c.l.b16 %v771
      %v858 = vunpack.c.l.b16 %v772
      %v859 = vunpack.c.l.b16 %v773
      %v860 = vunpack.c.l.b16 %v774
      %v861 = vunpack.c.l.b16 %v775
      %v862 = vunpack.c.l.b16 %v776
      %v863 = vunpack.c.l.b16 %v777
      %v864 = vunpack.c.l.b16 %v778
      %v865 = vunpack.c.l.b16 %v779
      %v866 = vunpack.c.l.b16 %v780
      %v867 = vunpack.c.l.b16 %v781
      %v868 = vunpack.c.l.b16 %v782
      %v869 = vunpack.c.l.b16 %v783
      %v870 = vunpack.c.l.b16 %v784
      %v871 = vunpack.c.l.b16 %v785
      %v872 = vunpack.c.l.b16 %v786
      %v873 = vpack.c.b16 %v858, %v857
      %v874 = vpack.c.b16 %v860, %v859
      %v875 = vpack.c.b16 %v862, %v861
      %v876 = vpack.c.b16 %v864, %v863
      %v877 = vpack.c.b16 %v866, %v865
      %v878 = vpack.c.b16 %v868, %v867
      %v879 = vpack.c.b16 %v870, %v869
      %v880 = vpack.c.b16 %v872, %v871
      %889 = vmatpush.bf16.msra.mxu0 %v880
      %890 = vmatpush.bf16.msra.mxu0 %v879
      %891 = vmatpush.bf16.msra.mxu0 %v878
      %892 = vmatpush.bf16.msra.mxu0 %v877
      %893 = vmatpush.bf16.msra.mxu0 %v876
      %894 = vmatpush.bf16.msra.mxu0 %v875
      %895 = vmatpush.bf16.msra.mxu0 %v874
      %896 = vmatpush.bf16.msra.mxu0 %v873
      %897 = vmatmul.bf16.gmra.mxu0 %v823
      %v898 = vpop.f32.mrf.mxu0
      %v899 = vadd.f32 0.0, %v898
      %v900 = vpop.f32.mrf.mxu0
      %901 = vmatmul.bf16.gmra.mxu0 %v824
      %v902 = vpop.f32.mrf.mxu0
      %v903 = vadd.f32 0.0, %v902
      %v904 = vpop.f32.mrf.mxu0
      %905 = vmatmul.bf16.gmra.mxu0 %v825
      %v906 = vpop.f32.mrf.mxu0
      %v907 = vadd.f32 0.0, %v906
      %v908 = vpop.f32.mrf.mxu0
      %909 = vmatmul.bf16.gmra.mxu0 %v826
      %v910 = vpop.f32.mrf.mxu0
      %v911 = vadd.f32 0.0, %v910
      %v912 = vpop.f32.mrf.mxu0
      %913 = vmatmul.bf16.gmra.mxu0 %v827
      %v914 = vpop.f32.mrf.mxu0
      %v915 = vadd.f32 0.0, %v914
      %v916 = vpop.f32.mrf.mxu0
      %917 = vmatmul.bf16.gmra.mxu0 %v828
      %v918 = vpop.f32.mrf.mxu0
      %v919 = vadd.f32 0.0, %v918
      %v920 = vpop.f32.mrf.mxu0
      %921 = vmatmul.bf16.gmra.mxu0 %v829
      %v922 = vpop.f32.mrf.mxu0
      %v923 = vadd.f32 0.0, %v922
      %v924 = vpop.f32.mrf.mxu0
      %925 = vmatmul.bf16.gmra.mxu0 %v830
      %v926 = vpop.f32.mrf.mxu0
      %v927 = vadd.f32 0.0, %v926
      %v928 = vpop.f32.mrf.mxu0
      %929 = vmatmul.bf16.gmra.mxu0 %v831
      %v930 = vpop.f32.mrf.mxu0
      %v931 = vpop.f32.mrf.mxu0
      %932 = vdwg.mxu0
      %v933 = vadd.f32 %v739, %v899
      %v934 = vadd.f32 %v740, %v903
      %v935 = vadd.f32 %v741, %v907
      %v936 = vadd.f32 %v742, %v911
      %v937 = vadd.f32 %v743, %v915
      %v938 = vadd.f32 %v744, %v919
      %v939 = vadd.f32 %v745, %v923
      %v940 = vadd.f32 %v746, %v927
      %s941 = sadd.s32 %s194, 432
      %s942 = sshra.s32 %s941, 3
      %s943 = sand.u32 %s941, 7
      %s944 = smul.addr %s942, 4
      %s945 = scalar_lea.vmem %s183, %s944
      %v946 = vld [vmem:[%s945] sm:$0xf]
      %v947 = vld [vmem:[%s945 + $0x4] sm:$0xf]
      %v948 = vld [vmem:[%s945 + $0x8] sm:$0xf]
      %v949 = vld [vmem:[%s945 + $0xc] sm:$0xf]
      %v950 = vld [vmem:[%s945 + $0x10] sm:$0xf]
      %v951 = vld [vmem:[%s945 + $0x14] sm:$0xf]
      %v952 = vld [vmem:[%s945 + $0x18] sm:$0xf]
      %v953 = vld [vmem:[%s945 + $0x1c] sm:$0xf]
      %v954 = vld [vmem:[%s945 + $0x20] sm:$0xf]
      %v955 = vld [vmem:[%s945 + $0x24] sm:$0xf]
      %v956 = vld [vmem:[%s945 + $0x28] sm:$0xf]
      %v957 = vld [vmem:[%s945 + $0x2c] sm:$0xf]
      %v958 = vld [vmem:[%s945 + $0x30] sm:$0xf]
      %v959 = vld [vmem:[%s945 + $0x34] sm:$0xf]
      %v960 = vld [vmem:[%s945 + $0x38] sm:$0xf]
      %v961 = vld [vmem:[%s945 + $0x3c] sm:$0xf]
      %v962 = vld [vmem:[%s945 + $0x40] sm:$0xf]
      %v963 = vld [vmem:[%s945 + $0x44] sm:$0xf]
      %s964 = scalar_lea.vmem %s1, 256
      %v965 = vld [vmem:[%s964] sm:$0xf]
      %v966 = vld [vmem:[%s964 + $0x4] sm:$0xf]
      %v967 = vld [vmem:[%s964 + $0x8] sm:$0xf]
      %v968 = vld [vmem:[%s964 + $0xc] sm:$0xf]
      %v969 = vld [vmem:[%s964 + $0x10] sm:$0xf]
      %v970 = vld [vmem:[%s964 + $0x14] sm:$0xf]
      %v971 = vld [vmem:[%s964 + $0x18] sm:$0xf]
      %v972 = vld [vmem:[%s964 + $0x1c] sm:$0xf]
      %v973 = vld [vmem:[%s964 + $0x20] sm:$0xf]
      %v974 = vld [vmem:[%s964 + $0x24] sm:$0xf]
      %v975 = vld [vmem:[%s964 + $0x28] sm:$0xf]
      %v976 = vld [vmem:[%s964 + $0x2c] sm:$0xf]
      %v977 = vld [vmem:[%s964 + $0x30] sm:$0xf]
      %v978 = vld [vmem:[%s964 + $0x34] sm:$0xf]
      %v979 = vld [vmem:[%s964 + $0x38] sm:$0xf]
      %v980 = vld [vmem:[%s964 + $0x3c] sm:$0xf]
      %v999 = vunpack.c.l.b16 %v946
      %v1000 = vunpack.c.l.b16 %v947
      %v1001 = vunpack.c.l.b16 %v948
      %v1002 = vunpack.c.l.b16 %v949
      %v1003 = vunpack.c.l.b16 %v950
      %v1004 = vunpack.c.l.b16 %v951
      %v1005 = vunpack.c.l.b16 %v952
      %v1006 = vunpack.c.l.b16 %v953
      %v1007 = vunpack.c.l.b16 %v954
      %v1008 = vunpack.c.l.b16 %v955
      %v1009 = vunpack.c.l.b16 %v956
      %v1010 = vunpack.c.l.b16 %v957
      %v1011 = vunpack.c.l.b16 %v958
      %v1012 = vunpack.c.l.b16 %v959
      %v1013 = vunpack.c.l.b16 %v960
      %v1014 = vunpack.c.l.b16 %v961
      %v1015 = vunpack.c.l.b16 %v962
      %v1016 = vunpack.c.l.b16 %v963
      %v1017 = vpack.c.b16 %v1000, %v999
      %v1018 = vpack.c.b16 %v1002, %v1001
      %v1019 = vpack.c.b16 %v1004, %v1003
      %v1020 = vpack.c.b16 %v1006, %v1005
      %v1021 = vpack.c.b16 %v1008, %v1007
      %v1022 = vpack.c.b16 %v1010, %v1009
      %v1023 = vpack.c.b16 %v1012, %v1011
      %v1024 = vpack.c.b16 %v1014, %v1013
      %v1025 = vpack.c.b16 %v1016, %v1015
      %v1051 = vunpack.c.l.b16 %v965
      %v1052 = vunpack.c.l.b16 %v966
      %v1053 = vunpack.c.l.b16 %v967
      %v1054 = vunpack.c.l.b16 %v968
      %v1055 = vunpack.c.l.b16 %v969
      %v1056 = vunpack.c.l.b16 %v970
      %v1057 = vunpack.c.l.b16 %v971
      %v1058 = vunpack.c.l.b16 %v972
      %v1059 = vunpack.c.l.b16 %v973
      %v1060 = vunpack.c.l.b16 %v974
      %v1061 = vunpack.c.l.b16 %v975
      %v1062 = vunpack.c.l.b16 %v976
      %v1063 = vunpack.c.l.b16 %v977
      %v1064 = vunpack.c.l.b16 %v978
      %v1065 = vunpack.c.l.b16 %v979
      %v1066 = vunpack.c.l.b16 %v980
      %v1067 = vpack.c.b16 %v1052, %v1051
      %v1068 = vpack.c.b16 %v1054, %v1053
      %v1069 = vpack.c.b16 %v1056, %v1055
      %v1070 = vpack.c.b16 %v1058, %v1057
      %v1071 = vpack.c.b16 %v1060, %v1059
      %v1072 = vpack.c.b16 %v1062, %v1061
      %v1073 = vpack.c.b16 %v1064, %v1063
      %v1074 = vpack.c.b16 %v1066, %v1065
      %1083 = vmatpush.bf16.msra.mxu0 %v1074
      %1084 = vmatpush.bf16.msra.mxu0 %v1073
      %1085 = vmatpush.bf16.msra.mxu0 %v1072
      %1086 = vmatpush.bf16.msra.mxu0 %v1071
      %1087 = vmatpush.bf16.msra.mxu0 %v1070
      %1088 = vmatpush.bf16.msra.mxu0 %v1069
      %1089 = vmatpush.bf16.msra.mxu0 %v1068
      %1090 = vmatpush.bf16.msra.mxu0 %v1067
      %1091 = vmatmul.bf16.gmra.mxu0 %v1017
      %v1092 = vpop.f32.mrf.mxu0
      %v1093 = vadd.f32 0.0, %v1092
      %v1094 = vpop.f32.mrf.mxu0
      %1095 = vmatmul.bf16.gmra.mxu0 %v1018
      %v1096 = vpop.f32.mrf.mxu0
      %v1097 = vadd.f32 0.0, %v1096
      %v1098 = vpop.f32.mrf.mxu0
      %1099 = vmatmul.bf16.gmra.mxu0 %v1019
      %v1100 = vpop.f32.mrf.mxu0
      %v1101 = vadd.f32 0.0, %v1100
      %v1102 = vpop.f32.mrf.mxu0
      %1103 = vmatmul.bf16.gmra.mxu0 %v1020
      %v1104 = vpop.f32.mrf.mxu0
      %v1105 = vadd.f32 0.0, %v1104
      %v1106 = vpop.f32.mrf.mxu0
      %1107 = vmatmul.bf16.gmra.mxu0 %v1021
      %v1108 = vpop.f32.mrf.mxu0
      %v1109 = vadd.f32 0.0, %v1108
      %v1110 = vpop.f32.mrf.mxu0
      %1111 = vmatmul.bf16.gmra.mxu0 %v1022
      %v1112 = vpop.f32.mrf.mxu0
      %v1113 = vadd.f32 0.0, %v1112
      %v1114 = vpop.f32.mrf.mxu0
      %1115 = vmatmul.bf16.gmra.mxu0 %v1023
      %v1116 = vpop.f32.mrf.mxu0
      %v1117 = vadd.f32 0.0, %v1116
      %v1118 = vpop.f32.mrf.mxu0
      %1119 = vmatmul.bf16.gmra.mxu0 %v1024
      %v1120 = vpop.f32.mrf.mxu0
      %v1121 = vadd.f32 0.0, %v1120
      %v1122 = vpop.f32.mrf.mxu0
      %1123 = vmatmul.bf16.gmra.mxu0 %v1025
      %v1124 = vpop.f32.mrf.mxu0
      %v1125 = vpop.f32.mrf.mxu0
      %1126 = vdwg.mxu0
      %v1127 = vadd.f32 %v933, %v1093
      %v1128 = vadd.f32 %v934, %v1097
      %v1129 = vadd.f32 %v935, %v1101
      %v1130 = vadd.f32 %v936, %v1105
      %v1131 = vadd.f32 %v937, %v1109
      %v1132 = vadd.f32 %v938, %v1113
      %v1133 = vadd.f32 %v939, %v1117
      %v1134 = vadd.f32 %v940, %v1121
      %s1135 = scalar_lea.vmem %s1, 320
      %v1136 = vld [vmem:[%s1135] sm:$0xf]
      %v1137 = vld [vmem:[%s1135 + $0x4] sm:$0xf]
      %v1138 = vld [vmem:[%s1135 + $0x8] sm:$0xf]
      %v1139 = vld [vmem:[%s1135 + $0xc] sm:$0xf]
      %v1140 = vld [vmem:[%s1135 + $0x10] sm:$0xf]
      %v1141 = vld [vmem:[%s1135 + $0x14] sm:$0xf]
      %v1142 = vld [vmem:[%s1135 + $0x18] sm:$0xf]
      %v1143 = vld [vmem:[%s1135 + $0x1c] sm:$0xf]
      %v1144 = vld [vmem:[%s1135 + $0x20] sm:$0xf]
      %v1145 = vld [vmem:[%s1135 + $0x24] sm:$0xf]
      %v1146 = vld [vmem:[%s1135 + $0x28] sm:$0xf]
      %v1147 = vld [vmem:[%s1135 + $0x2c] sm:$0xf]
      %v1148 = vld [vmem:[%s1135 + $0x30] sm:$0xf]
      %v1149 = vld [vmem:[%s1135 + $0x34] sm:$0xf]
      %v1150 = vld [vmem:[%s1135 + $0x38] sm:$0xf]
      %v1151 = vld [vmem:[%s1135 + $0x3c] sm:$0xf]
      %v1168 = vunpack.c.l.b16 %v1136
      %v1169 = vunpack.c.l.b16 %v1137
      %v1170 = vunpack.c.l.b16 %v1138
      %v1171 = vunpack.c.l.b16 %v1139
      %v1172 = vunpack.c.l.b16 %v1140
      %v1173 = vunpack.c.l.b16 %v1141
      %v1174 = vunpack.c.l.b16 %v1142
      %v1175 = vunpack.c.l.b16 %v1143
      %v1176 = vunpack.c.l.b16 %v1144
      %v1177 = vunpack.c.l.b16 %v1145
      %v1178 = vunpack.c.l.b16 %v1146
      %v1179 = vunpack.c.l.b16 %v1147
      %v1180 = vunpack.c.l.b16 %v1148
      %v1181 = vunpack.c.l.b16 %v1149
      %v1182 = vunpack.c.l.b16 %v1150
      %v1183 = vunpack.c.l.b16 %v1151
      %v1184 = vpack.c.b16 %v1169, %v1168
      %v1185 = vpack.c.b16 %v1171, %v1170
      %v1186 = vpack.c.b16 %v1173, %v1172
      %v1187 = vpack.c.b16 %v1175, %v1174
      %v1188 = vpack.c.b16 %v1177, %v1176
      %v1189 = vpack.c.b16 %v1179, %v1178
      %v1190 = vpack.c.b16 %v1181, %v1180
      %v1191 = vpack.c.b16 %v1183, %v1182
      %1200 = vmatpush.bf16.msra.mxu0 %v1191
      %1201 = vmatpush.bf16.msra.mxu0 %v1190
      %1202 = vmatpush.bf16.msra.mxu0 %v1189
      %1203 = vmatpush.bf16.msra.mxu0 %v1188
      %1204 = vmatpush.bf16.msra.mxu0 %v1187
      %1205 = vmatpush.bf16.msra.mxu0 %v1186
      %1206 = vmatpush.bf16.msra.mxu0 %v1185
      %1207 = vmatpush.bf16.msra.mxu0 %v1184
      %1208 = vmatmul.bf16.gmra.mxu0 %v823
      %v1209 = vpop.f32.mrf.mxu0
      %v1210 = vadd.f32 0.0, %v1209
      %v1211 = vpop.f32.mrf.mxu0
      %v1212 = vadd.f32 0.0, %v1211
      %1213 = vmatmul.bf16.gmra.mxu0 %v824
      %v1214 = vpop.f32.mrf.mxu0
      %v1215 = vadd.f32 0.0, %v1214
      %v1216 = vpop.f32.mrf.mxu0
      %v1217 = vadd.f32 0.0, %v1216
      %1218 = vmatmul.bf16.gmra.mxu0 %v825
      %v1219 = vpop.f32.mrf.mxu0
      %v1220 = vadd.f32 0.0, %v1219
      %v1221 = vpop.f32.mrf.mxu0
      %v1222 = vadd.f32 0.0, %v1221
      %1223 = vmatmul.bf16.gmra.mxu0 %v826
      %v1224 = vpop.f32.mrf.mxu0
      %v1225 = vadd.f32 0.0, %v1224
      %v1226 = vpop.f32.mrf.mxu0
      %v1227 = vadd.f32 0.0, %v1226
      %1228 = vmatmul.bf16.gmra.mxu0 %v827
      %v1229 = vpop.f32.mrf.mxu0
      %v1230 = vadd.f32 0.0, %v1229
      %v1231 = vpop.f32.mrf.mxu0
      %v1232 = vadd.f32 0.0, %v1231
      %1233 = vmatmul.bf16.gmra.mxu0 %v828
      %v1234 = vpop.f32.mrf.mxu0
      %v1235 = vadd.f32 0.0, %v1234
      %v1236 = vpop.f32.mrf.mxu0
      %v1237 = vadd.f32 0.0, %v1236
      %1238 = vmatmul.bf16.gmra.mxu0 %v829
      %v1239 = vpop.f32.mrf.mxu0
      %v1240 = vadd.f32 0.0, %v1239
      %v1241 = vpop.f32.mrf.mxu0
      %v1242 = vadd.f32 0.0, %v1241
      %1243 = vmatmul.bf16.gmra.mxu0 %v830
      %v1244 = vpop.f32.mrf.mxu0
      %v1245 = vadd.f32 0.0, %v1244
      %v1246 = vpop.f32.mrf.mxu0
      %v1247 = vadd.f32 0.0, %v1246
      %1248 = vmatmul.bf16.gmra.mxu0 %v831
      %v1249 = vpop.f32.mrf.mxu0
      %v1250 = vpop.f32.mrf.mxu0
      %1251 = vdwg.mxu0
      %v1268 = vrot.slane %v1210, 1
      %v1269 = vrot.slane %v1212, 1
      %v1270 = vsel %vm706, %v1268, %v1269
      %v1271 = vrot.slane %v1215, 1
      %v1272 = vrot.slane %v1217, 1
      %v1273 = vsel %vm706, %v1271, %v1272
      %v1274 = vrot.slane %v1220, 1
      %v1275 = vrot.slane %v1222, 1
      %v1276 = vsel %vm706, %v1274, %v1275
      %v1277 = vrot.slane %v1225, 1
      %v1278 = vrot.slane %v1227, 1
      %v1279 = vsel %vm706, %v1277, %v1278
      %v1280 = vrot.slane %v1230, 1
      %v1281 = vrot.slane %v1232, 1
      %v1282 = vsel %vm706, %v1280, %v1281
      %v1283 = vrot.slane %v1235, 1
      %v1284 = vrot.slane %v1237, 1
      %v1285 = vsel %vm706, %v1283, %v1284
      %v1286 = vrot.slane %v1240, 1
      %v1287 = vrot.slane %v1242, 1
      %v1288 = vsel %vm706, %v1286, %v1287
      %v1289 = vrot.slane %v1245, 1
      %v1290 = vrot.slane %v1247, 1
      %v1291 = vsel %vm706, %v1289, %v1290
      %v1300 = vadd.f32 %v1127, %v1270
      %v1301 = vadd.f32 %v1128, %v1273
      %v1302 = vadd.f32 %v1129, %v1276
      %v1303 = vadd.f32 %v1130, %v1279
      %v1304 = vadd.f32 %v1131, %v1282
      %v1305 = vadd.f32 %v1132, %v1285
      %v1306 = vadd.f32 %v1133, %v1288
      %v1307 = vadd.f32 %v1134, %v1291
      %s1308 = scalar_lea.vmem %s1, 384
      %v1309 = vld [vmem:[%s1308] sm:$0xf]
      %v1310 = vld [vmem:[%s1308 + $0x4] sm:$0xf]
      %v1311 = vld [vmem:[%s1308 + $0x8] sm:$0xf]
      %v1312 = vld [vmem:[%s1308 + $0xc] sm:$0xf]
      %v1313 = vld [vmem:[%s1308 + $0x10] sm:$0xf]
      %v1314 = vld [vmem:[%s1308 + $0x14] sm:$0xf]
      %v1315 = vld [vmem:[%s1308 + $0x18] sm:$0xf]
      %v1316 = vld [vmem:[%s1308 + $0x1c] sm:$0xf]
      %v1317 = vld [vmem:[%s1308 + $0x20] sm:$0xf]
      %v1318 = vld [vmem:[%s1308 + $0x24] sm:$0xf]
      %v1319 = vld [vmem:[%s1308 + $0x28] sm:$0xf]
      %v1320 = vld [vmem:[%s1308 + $0x2c] sm:$0xf]
      %v1321 = vld [vmem:[%s1308 + $0x30] sm:$0xf]
      %v1322 = vld [vmem:[%s1308 + $0x34] sm:$0xf]
      %v1323 = vld [vmem:[%s1308 + $0x38] sm:$0xf]
      %v1324 = vld [vmem:[%s1308 + $0x3c] sm:$0xf]
      %v1341 = vunpack.c.l.b16 %v1309
      %v1342 = vunpack.c.l.b16 %v1310
      %v1343 = vunpack.c.l.b16 %v1311
      %v1344 = vunpack.c.l.b16 %v1312
      %v1345 = vunpack.c.l.b16 %v1313
      %v1346 = vunpack.c.l.b16 %v1314
      %v1347 = vunpack.c.l.b16 %v1315
      %v1348 = vunpack.c.l.b16 %v1316
      %v1349 = vunpack.c.l.b16 %v1317
      %v1350 = vunpack.c.l.b16 %v1318
      %v1351 = vunpack.c.l.b16 %v1319
      %v1352 = vunpack.c.l.b16 %v1320
      %v1353 = vunpack.c.l.b16 %v1321
      %v1354 = vunpack.c.l.b16 %v1322
      %v1355 = vunpack.c.l.b16 %v1323
      %v1356 = vunpack.c.l.b16 %v1324
      %v1357 = vpack.c.b16 %v1342, %v1341
      %v1358 = vpack.c.b16 %v1344, %v1343
      %v1359 = vpack.c.b16 %v1346, %v1345
      %v1360 = vpack.c.b16 %v1348, %v1347
      %v1361 = vpack.c.b16 %v1350, %v1349
      %v1362 = vpack.c.b16 %v1352, %v1351
      %v1363 = vpack.c.b16 %v1354, %v1353
      %v1364 = vpack.c.b16 %v1356, %v1355
      %1373 = vmatpush.bf16.msra.mxu0 %v1364
      %1374 = vmatpush.bf16.msra.mxu0 %v1363
      %1375 = vmatpush.bf16.msra.mxu0 %v1362
      %1376 = vmatpush.bf16.msra.mxu0 %v1361
      %1377 = vmatpush.bf16.msra.mxu0 %v1360
      %1378 = vmatpush.bf16.msra.mxu0 %v1359
      %1379 = vmatpush.bf16.msra.mxu0 %v1358
      %1380 = vmatpush.bf16.msra.mxu0 %v1357
      %1381 = vmatmul.bf16.gmra.mxu0 %v269
      %v1382 = vpop.f32.mrf.mxu0
      %v1383 = vpop.f32.mrf.mxu0
      %1384 = vmatmul.bf16.gmra.mxu0 %v270
      %v1385 = vpop.f32.mrf.mxu0
      %v1386 = vadd.f32 0.0, %v1385
      %v1387 = vpop.f32.mrf.mxu0
      %1388 = vmatmul.bf16.gmra.mxu0 %v271
      %v1389 = vpop.f32.mrf.mxu0
      %v1390 = vadd.f32 0.0, %v1389
      %v1391 = vpop.f32.mrf.mxu0
      %1392 = vmatmul.bf16.gmra.mxu0 %v272
      %v1393 = vpop.f32.mrf.mxu0
      %v1394 = vadd.f32 0.0, %v1393
      %v1395 = vpop.f32.mrf.mxu0
      %1396 = vmatmul.bf16.gmra.mxu0 %v273
      %v1397 = vpop.f32.mrf.mxu0
      %v1398 = vadd.f32 0.0, %v1397
      %v1399 = vpop.f32.mrf.mxu0
      %1400 = vmatmul.bf16.gmra.mxu0 %v274
      %v1401 = vpop.f32.mrf.mxu0
      %v1402 = vadd.f32 0.0, %v1401
      %v1403 = vpop.f32.mrf.mxu0
      %1404 = vmatmul.bf16.gmra.mxu0 %v275
      %v1405 = vpop.f32.mrf.mxu0
      %v1406 = vadd.f32 0.0, %v1405
      %v1407 = vpop.f32.mrf.mxu0
      %1408 = vmatmul.bf16.gmra.mxu0 %v276
      %v1409 = vpop.f32.mrf.mxu0
      %v1410 = vadd.f32 0.0, %v1409
      %v1411 = vpop.f32.mrf.mxu0
      %1412 = vmatmul.bf16.gmra.mxu0 %v277
      %v1413 = vpop.f32.mrf.mxu0
      %v1414 = vadd.f32 0.0, %v1413
      %v1415 = vpop.f32.mrf.mxu0
      %1416 = vdwg.mxu0
      %v1417 = vadd.f32 %v1300, %v1386
      %v1418 = vadd.f32 %v1301, %v1390
      %v1419 = vadd.f32 %v1302, %v1394
      %v1420 = vadd.f32 %v1303, %v1398
      %v1421 = vadd.f32 %v1304, %v1402
      %v1422 = vadd.f32 %v1305, %v1406
      %v1423 = vadd.f32 %v1306, %v1410
      %v1424 = vadd.f32 %v1307, %v1414
      %s1425 = scalar_lea.vmem %s1, 448
      %v1426 = vld [vmem:[%s1425] sm:$0xf]
      %v1427 = vld [vmem:[%s1425 + $0x4] sm:$0xf]
      %v1428 = vld [vmem:[%s1425 + $0x8] sm:$0xf]
      %v1429 = vld [vmem:[%s1425 + $0xc] sm:$0xf]
      %v1430 = vld [vmem:[%s1425 + $0x10] sm:$0xf]
      %v1431 = vld [vmem:[%s1425 + $0x14] sm:$0xf]
      %v1432 = vld [vmem:[%s1425 + $0x18] sm:$0xf]
      %v1433 = vld [vmem:[%s1425 + $0x1c] sm:$0xf]
      %v1434 = vld [vmem:[%s1425 + $0x20] sm:$0xf]
      %v1435 = vld [vmem:[%s1425 + $0x24] sm:$0xf]
      %v1436 = vld [vmem:[%s1425 + $0x28] sm:$0xf]
      %v1437 = vld [vmem:[%s1425 + $0x2c] sm:$0xf]
      %v1438 = vld [vmem:[%s1425 + $0x30] sm:$0xf]
      %v1439 = vld [vmem:[%s1425 + $0x34] sm:$0xf]
      %v1440 = vld [vmem:[%s1425 + $0x38] sm:$0xf]
      %v1441 = vld [vmem:[%s1425 + $0x3c] sm:$0xf]
      %v1458 = vunpack.c.l.b16 %v1426
      %v1459 = vunpack.c.l.b16 %v1427
      %v1460 = vunpack.c.l.b16 %v1428
      %v1461 = vunpack.c.l.b16 %v1429
      %v1462 = vunpack.c.l.b16 %v1430
      %v1463 = vunpack.c.l.b16 %v1431
      %v1464 = vunpack.c.l.b16 %v1432
      %v1465 = vunpack.c.l.b16 %v1433
      %v1466 = vunpack.c.l.b16 %v1434
      %v1467 = vunpack.c.l.b16 %v1435
      %v1468 = vunpack.c.l.b16 %v1436
      %v1469 = vunpack.c.l.b16 %v1437
      %v1470 = vunpack.c.l.b16 %v1438
      %v1471 = vunpack.c.l.b16 %v1439
      %v1472 = vunpack.c.l.b16 %v1440
      %v1473 = vunpack.c.l.b16 %v1441
      %v1474 = vpack.c.b16 %v1459, %v1458
      %v1475 = vpack.c.b16 %v1461, %v1460
      %v1476 = vpack.c.b16 %v1463, %v1462
      %v1477 = vpack.c.b16 %v1465, %v1464
      %v1478 = vpack.c.b16 %v1467, %v1466
      %v1479 = vpack.c.b16 %v1469, %v1468
      %v1480 = vpack.c.b16 %v1471, %v1470
      %v1481 = vpack.c.b16 %v1473, %v1472
      %1490 = vmatpush.bf16.msra.mxu0 %v1481
      %1491 = vmatpush.bf16.msra.mxu0 %v1480
      %1492 = vmatpush.bf16.msra.mxu0 %v1479
      %1493 = vmatpush.bf16.msra.mxu0 %v1478
      %1494 = vmatpush.bf16.msra.mxu0 %v1477
      %1495 = vmatpush.bf16.msra.mxu0 %v1476
      %1496 = vmatpush.bf16.msra.mxu0 %v1475
      %1497 = vmatpush.bf16.msra.mxu0 %v1474
      %1498 = vmatmul.bf16.gmra.mxu0 %v455
      %v1499 = vpop.f32.mrf.mxu0
      %v1500 = vpop.f32.mrf.mxu0
      %1501 = vmatmul.bf16.gmra.mxu0 %v456
      %v1502 = vpop.f32.mrf.mxu0
      %v1503 = vadd.f32 0.0, %v1502
      %v1504 = vpop.f32.mrf.mxu0
      %1505 = vmatmul.bf16.gmra.mxu0 %v457
      %v1506 = vpop.f32.mrf.mxu0
      %v1507 = vadd.f32 0.0, %v1506
      %v1508 = vpop.f32.mrf.mxu0
      %1509 = vmatmul.bf16.gmra.mxu0 %v458
      %v1510 = vpop.f32.mrf.mxu0
      %v1511 = vadd.f32 0.0, %v1510
      %v1512 = vpop.f32.mrf.mxu0
      %1513 = vmatmul.bf16.gmra.mxu0 %v459
      %v1514 = vpop.f32.mrf.mxu0
      %v1515 = vadd.f32 0.0, %v1514
      %v1516 = vpop.f32.mrf.mxu0
      %1517 = vmatmul.bf16.gmra.mxu0 %v460
      %v1518 = vpop.f32.mrf.mxu0
      %v1519 = vadd.f32 0.0, %v1518
      %v1520 = vpop.f32.mrf.mxu0
      %1521 = vmatmul.bf16.gmra.mxu0 %v461
      %v1522 = vpop.f32.mrf.mxu0
      %v1523 = vadd.f32 0.0, %v1522
      %v1524 = vpop.f32.mrf.mxu0
      %1525 = vmatmul.bf16.gmra.mxu0 %v462
      %v1526 = vpop.f32.mrf.mxu0
      %v1527 = vadd.f32 0.0, %v1526
      %v1528 = vpop.f32.mrf.mxu0
      %1529 = vmatmul.bf16.gmra.mxu0 %v463
      %v1530 = vpop.f32.mrf.mxu0
      %v1531 = vadd.f32 0.0, %v1530
      %v1532 = vpop.f32.mrf.mxu0
      %1533 = vdwg.mxu0
      %v1534 = vadd.f32 %v1417, %v1503
      %v1535 = vadd.f32 %v1418, %v1507
      %v1536 = vadd.f32 %v1419, %v1511
      %v1537 = vadd.f32 %v1420, %v1515
      %v1538 = vadd.f32 %v1421, %v1519
      %v1539 = vadd.f32 %v1422, %v1523
      %v1540 = vadd.f32 %v1423, %v1527
      %v1541 = vadd.f32 %v1424, %v1531
      %s1542 = scalar_lea.vmem %s1, 512
      %v1543 = vld [vmem:[%s1542] sm:$0xf]
      %v1544 = vld [vmem:[%s1542 + $0x4] sm:$0xf]
      %v1545 = vld [vmem:[%s1542 + $0x8] sm:$0xf]
      %v1546 = vld [vmem:[%s1542 + $0xc] sm:$0xf]
      %v1547 = vld [vmem:[%s1542 + $0x10] sm:$0xf]
      %v1548 = vld [vmem:[%s1542 + $0x14] sm:$0xf]
      %v1549 = vld [vmem:[%s1542 + $0x18] sm:$0xf]
      %v1550 = vld [vmem:[%s1542 + $0x1c] sm:$0xf]
      %v1551 = vld [vmem:[%s1542 + $0x20] sm:$0xf]
      %v1552 = vld [vmem:[%s1542 + $0x24] sm:$0xf]
      %v1553 = vld [vmem:[%s1542 + $0x28] sm:$0xf]
      %v1554 = vld [vmem:[%s1542 + $0x2c] sm:$0xf]
      %v1555 = vld [vmem:[%s1542 + $0x30] sm:$0xf]
      %v1556 = vld [vmem:[%s1542 + $0x34] sm:$0xf]
      %v1557 = vld [vmem:[%s1542 + $0x38] sm:$0xf]
      %v1558 = vld [vmem:[%s1542 + $0x3c] sm:$0xf]
      %v1575 = vunpack.c.l.b16 %v1543
      %v1576 = vunpack.c.l.b16 %v1544
      %v1577 = vunpack.c.l.b16 %v1545
      %v1578 = vunpack.c.l.b16 %v1546
      %v1579 = vunpack.c.l.b16 %v1547
      %v1580 = vunpack.c.l.b16 %v1548
      %v1581 = vunpack.c.l.b16 %v1549
      %v1582 = vunpack.c.l.b16 %v1550
      %v1583 = vunpack.c.l.b16 %v1551
      %v1584 = vunpack.c.l.b16 %v1552
      %v1585 = vunpack.c.l.b16 %v1553
      %v1586 = vunpack.c.l.b16 %v1554
      %v1587 = vunpack.c.l.b16 %v1555
      %v1588 = vunpack.c.l.b16 %v1556
      %v1589 = vunpack.c.l.b16 %v1557
      %v1590 = vunpack.c.l.b16 %v1558
      %v1591 = vpack.c.b16 %v1576, %v1575
      %v1592 = vpack.c.b16 %v1578, %v1577
      %v1593 = vpack.c.b16 %v1580, %v1579
      %v1594 = vpack.c.b16 %v1582, %v1581
      %v1595 = vpack.c.b16 %v1584, %v1583
      %v1596 = vpack.c.b16 %v1586, %v1585
      %v1597 = vpack.c.b16 %v1588, %v1587
      %v1598 = vpack.c.b16 %v1590, %v1589
      %1607 = vmatpush.bf16.msra.mxu0 %v1598
      %1608 = vmatpush.bf16.msra.mxu0 %v1597
      %1609 = vmatpush.bf16.msra.mxu0 %v1596
      %1610 = vmatpush.bf16.msra.mxu0 %v1595
      %1611 = vmatpush.bf16.msra.mxu0 %v1594
      %1612 = vmatpush.bf16.msra.mxu0 %v1593
      %1613 = vmatpush.bf16.msra.mxu0 %v1592
      %1614 = vmatpush.bf16.msra.mxu0 %v1591
      %1615 = vmatmul.bf16.gmra.mxu0 %v269
      %v1616 = vpop.f32.mrf.mxu0
      %v1617 = vpop.f32.mrf.mxu0
      %1618 = vmatmul.bf16.gmra.mxu0 %v270
      %v1619 = vpop.f32.mrf.mxu0
      %v1620 = vadd.f32 0.0, %v1619
      %v1621 = vpop.f32.mrf.mxu0
      %v1622 = vadd.f32 0.0, %v1621
      %1623 = vmatmul.bf16.gmra.mxu0 %v271
      %v1624 = vpop.f32.mrf.mxu0
      %v1625 = vadd.f32 0.0, %v1624
      %v1626 = vpop.f32.mrf.mxu0
      %v1627 = vadd.f32 0.0, %v1626
      %1628 = vmatmul.bf16.gmra.mxu0 %v272
      %v1629 = vpop.f32.mrf.mxu0
      %v1630 = vadd.f32 0.0, %v1629
      %v1631 = vpop.f32.mrf.mxu0
      %v1632 = vadd.f32 0.0, %v1631
      %1633 = vmatmul.bf16.gmra.mxu0 %v273
      %v1634 = vpop.f32.mrf.mxu0
      %v1635 = vadd.f32 0.0, %v1634
      %v1636 = vpop.f32.mrf.mxu0
      %v1637 = vadd.f32 0.0, %v1636
      %1638 = vmatmul.bf16.gmra.mxu0 %v274
      %v1639 = vpop.f32.mrf.mxu0
      %v1640 = vadd.f32 0.0, %v1639
      %v1641 = vpop.f32.mrf.mxu0
      %v1642 = vadd.f32 0.0, %v1641
      %1643 = vmatmul.bf16.gmra.mxu0 %v275
      %v1644 = vpop.f32.mrf.mxu0
      %v1645 = vadd.f32 0.0, %v1644
      %v1646 = vpop.f32.mrf.mxu0
      %v1647 = vadd.f32 0.0, %v1646
      %1648 = vmatmul.bf16.gmra.mxu0 %v276
      %v1649 = vpop.f32.mrf.mxu0
      %v1650 = vadd.f32 0.0, %v1649
      %v1651 = vpop.f32.mrf.mxu0
      %v1652 = vadd.f32 0.0, %v1651
      %1653 = vmatmul.bf16.gmra.mxu0 %v277
      %v1654 = vpop.f32.mrf.mxu0
      %v1655 = vadd.f32 0.0, %v1654
      %v1656 = vpop.f32.mrf.mxu0
      %v1657 = vadd.f32 0.0, %v1656
      %1658 = vdwg.mxu0
      %v1675 = vrot.slane %v1620, 1
      %v1676 = vrot.slane %v1622, 1
      %v1677 = vsel %vm706, %v1675, %v1676
      %v1678 = vrot.slane %v1625, 1
      %v1679 = vrot.slane %v1627, 1
      %v1680 = vsel %vm706, %v1678, %v1679
      %v1681 = vrot.slane %v1630, 1
      %v1682 = vrot.slane %v1632, 1
      %v1683 = vsel %vm706, %v1681, %v1682
      %v1684 = vrot.slane %v1635, 1
      %v1685 = vrot.slane %v1637, 1
      %v1686 = vsel %vm706, %v1684, %v1685
      %v1687 = vrot.slane %v1640, 1
      %v1688 = vrot.slane %v1642, 1
      %v1689 = vsel %vm706, %v1687, %v1688
      %v1690 = vrot.slane %v1645, 1
      %v1691 = vrot.slane %v1647, 1
      %v1692 = vsel %vm706, %v1690, %v1691
      %v1693 = vrot.slane %v1650, 1
      %v1694 = vrot.slane %v1652, 1
      %v1695 = vsel %vm706, %v1693, %v1694
      %v1696 = vrot.slane %v1655, 1
      %v1697 = vrot.slane %v1657, 1
      %v1698 = vsel %vm706, %v1696, %v1697
      %v1707 = vadd.f32 %v1534, %v1677
      %v1708 = vadd.f32 %v1535, %v1680
      %v1709 = vadd.f32 %v1536, %v1683
      %v1710 = vadd.f32 %v1537, %v1686
      %v1711 = vadd.f32 %v1538, %v1689
      %v1712 = vadd.f32 %v1539, %v1692
      %v1713 = vadd.f32 %v1540, %v1695
      %v1714 = vadd.f32 %v1541, %v1698
      %v1715 = vld [vmem:[%s2] sm:$0x1]
      %v1717 = vperm.slane %v1715, 0
      %v1719 = vadd.f32 %v1707, %v1717
      %v1720 = vadd.f32 %v1708, %v1717
      %v1721 = vadd.f32 %v1709, %v1717
      %v1722 = vadd.f32 %v1710, %v1717
      %v1723 = vadd.f32 %v1711, %v1717
      %v1724 = vadd.f32 %v1712, %v1717
      %v1725 = vadd.f32 %v1713, %v1717
      %v1726 = vadd.f32 %v1714, %v1717
      %v1727 = vmax.f32 %v1719, 0.0
      %v1728 = vmax.f32 %v1720, 0.0
      %v1729 = vmax.f32 %v1721, 0.0
      %v1730 = vmax.f32 %v1722, 0.0
      %v1731 = vmax.f32 %v1723, 0.0
      %v1732 = vmax.f32 %v1724, 0.0
      %v1733 = vmax.f32 %v1725, 0.0
      %v1734 = vmax.f32 %v1726, 0.0
      %v1735 = vpack.c.bf16 %v1727, %v1727
      %v1736 = vpack.c.bf16 %v1728, %v1728
      %v1737 = vpack.c.bf16 %v1729, %v1729
      %v1738 = vpack.c.bf16 %v1730, %v1730
      %v1739 = vpack.c.bf16 %v1731, %v1731
      %v1740 = vpack.c.bf16 %v1732, %v1732
      %v1741 = vpack.c.bf16 %v1733, %v1733
      %v1742 = vpack.c.bf16 %v1734, %v1734
      %1743 = vst [vmem:[%s192] sm:$0xf] %v1735
      %1744 = vst [vmem:[%s192 + $0x4] sm:$0xf] %v1736
      %1745 = vst [vmem:[%s192 + $0x8] sm:$0xf] %v1737
      %1746 = vst [vmem:[%s192 + $0xc] sm:$0xf] %v1738
      %1747 = vst [vmem:[%s192 + $0x10] sm:$0xf] %v1739
      %1748 = vst [vmem:[%s192 + $0x14] sm:$0xf] %v1740
      %1749 = vst [vmem:[%s192 + $0x18] sm:$0xf] %v1741
      %1750 = vst [vmem:[%s192 + $0x1c] sm:$0xf] %v1742
      %s1751 = smul.u32 8, %s19
      %p1752 = scmp.lt.s32.totalorder %s18, 1
      %s1753 = scalar_select %p1752, %s18, 1
      %p1754 = scmp.lt.s32.totalorder %s1751, 7
      %s1755 = scalar_select %p1754, %s1751, 7
      %s1756 = smul.addr %s1753, 8
      %s1757 = sadd.s32 %s1755, %s1756
      %s1758 = smul.addr %s1757, 4
      %s1759 = scalar_lea.vmem %s3, %s1758
      // Predicated region
      $region33: #{bottleneck_forward.4} parent=31 // pred_check
        %p1760 = pneg %p114
      $region34: #{bottleneck_forward.4} parent=31 // pred_check_branch
        %1762 = sbr.rel (%p1760) target = $region36
      $region35: #{bottleneck_forward.4} parent=31 // pred_region
        %s1763 = smul.u32 8, %s19
      $region36: #{bottleneck_forward.4} parent=31 // pred_fallthru
        _
    $region32: #{bottleneck_forward.4} parent=5 // pred_fallthru
      _
    %p1764 = scmp.le.s32.totalorder 2, %s9
    // Predicated region
    $region37: #{bottleneck_forward.4} parent=5 // pred_check
      %p1765 = pneg %p1764
    $region38: #{bottleneck_forward.4} parent=5 // pred_check_branch
      %1767 = sbr.rel (%p1765) target = $region40
    $region39: #{bottleneck_forward.4} parent=5 // pred_region
      %s1768 = ssub.s32 %s9, 2
      // Predicated region
      $region41: #{bottleneck_forward.4} parent=39 // pred_check
        %p1769 = pneg %p120
      $region42: #{bottleneck_forward.4} parent=39 // pred_check_branch
        %1771 = sbr.rel (%p1769) target = $region44
      $region43: #{bottleneck_forward.4} parent=39 // pred_region
        %s1772 = smul.u32 8, %s21
        %p1773 = scmp.lt.s32.totalorder %s20, 1
        %s1774 = scalar_select %p1773, %s20, 1
        %p1775 = scmp.lt.s32.totalorder %s1772, 7
        %s1776 = scalar_select %p1775, %s1772, 7
        %s1777 = smul.addr %s1774, 8
        %s1778 = sadd.s32 %s1776, %s1777
        %s1779 = smul.addr %s1778, 4
        %s1780 = scalar_lea.vmem %s3, %s1779
      $region44: #{bottleneck_forward.4} parent=39 // pred_fallthru
        _
    $region40: #{bottleneck_forward.4} parent=5 // pred_fallthru
      _
  $region6: #{bottleneck_forward.4} parent=0 // loop_footer
    %s13 = sadd.s32 1, %s9
  $region7: #{bottleneck_forward.4} parent=0 // loop_footer_branch
    %8 = sbr.rel target = $region3
  $region8: #{bottleneck_forward.4} parent=0 // loop_exit
    _

</llo_original>
